<compile_context>
chip_gen: v6e
topology: v6e:2x2x1
jax: 0.10.0
libtpu: 0.0.40
codegen_flags: <defaults>
</compile_context>

<pallas_src>
import numpy as np
import jax
import jax.numpy as jnp
from jax.experimental import pallas as pl
from jax.experimental.pallas import tpu as pltpu


def _fourier_kernel(x_ref, bt_ref, o_ref):
    # x_ref:  (tm, K)      -- row tile of inputs
    # bt_ref: (K, F)       -- full (2*pi)*B.T, resident in VMEM (constant index map)
    # o_ref:  (tm, 2*F)    -- output tile laid out as [sin | cos]
    x = x_ref[...]
    bt = bt_ref[...]
    K, F = bt.shape

    if K <= 8:
        # Degenerate-K matmul: avoid MXU push/pop + layout shuffles, use
        # unrolled VPU broadcast-FMAs (VALU has headroom; kernel is
        # EUP/store-bound).
        proj = x[:, 0:1] * bt[0:1, :]
        for k in range(1, K):
            proj = proj + x[:, k:k + 1] * bt[k:k + 1, :]
    else:
        proj = jnp.dot(x, bt, preferred_element_type=jnp.float32)

    proj = proj.astype(jnp.float32)
    # Direct half writes: no concatenate, no extra full-tile VMEM copy.
    o_ref[:, :F] = jnp.sin(proj).astype(o_ref.dtype)
    o_ref[:, F:] = jnp.cos(proj).astype(o_ref.dtype)


def _round_up(a, m):
    return ((a + m - 1) // m) * m


def fourier_features(x, B, *, tm=None):
    """x: (N, input_dim), B: (num_features, input_dim). Returns (N, 2*num_features) f32."""
    N, K = x.shape
    F, K2 = B.shape
    assert K == K2, "B second dim must match x last dim"

    # Fold 2*pi into the frozen projection matrix once (one-time op; B never changes).
    Bt = (2.0 * np.pi) * B.T.astype(jnp.float32)  # (K, F)

    # --- Row-tile selection ---------------------------------------------------
    # Fixed tile -> multi-step grid -> double-buffered pipelining. Clamp so the
    # per-step VMEM footprint (double-buffered x tile + out tile, plus resident
    # Bt) stays well under the v7x 32 MiB scoped limit.
    if tm is None:
        tm = 512
    tm = max(8, _round_up(min(tm, N), 8))
    bytes_per_row = 4 * (K + 2 * F) * 2          # f32, x+out, double-buffered
    vmem_budget = 24 * 1024 * 1024
    max_tm = max(8, ((vmem_budget - 4 * K * F) // bytes_per_row) // 8 * 8)
    tm = min(tm, max_tm)

    grid_m = pl.cdiv(N, tm)
    Np = grid_m * tm
    x_in = x if Np == N else jnp.pad(x, ((0, Np - N), (0, 0)))

    out = pl.pallas_call(
        _fourier_kernel,
        out_shape=jax.ShapeDtypeStruct((Np, 2 * F), jnp.float32),
        grid_spec=pltpu.PrefetchScalarGridSpec(
            num_scalar_prefetch=0,
            grid=(grid_m,),
            in_specs=[
                pl.BlockSpec((tm, K), lambda i: (i, 0)),   # row tile of x
                pl.BlockSpec((K, F), lambda i: (0, 0)),    # resident (2*pi)*B.T
            ],
            out_specs=pl.BlockSpec((tm, 2 * F), lambda i: (i, 0)),
        ),
        compiler_params=pltpu.CompilerParams(
            dimension_semantics=("parallel",),
            vmem_limit_bytes=32 * 1024 * 1024,
        ),
    )(x_in, Bt)

    return out[:N] if Np != N else out


if __name__ == "__main__":
    # Small shapes consistent with the module: coordinate inputs of dim 4,
    # 64 Fourier features (so 2F = 128 -> lane-dense output), 200 points
    # (deliberately NOT a multiple of the row tile to exercise ragged handling).
    input_dim = 4
    num_features = 64
    scale = 10.0
    N = 200

    key = jax.random.PRNGKey(0)
    kB, kx = jax.random.split(key)
    B = jax.random.normal(kB, (num_features, input_dim), dtype=jnp.float32) * scale
    x = jax.random.normal(kx, (N, input_dim), dtype=jnp.float32)

    out = fourier_features(x, B, tm=64)   # 4-step grid -> pipelined
    out = jax.block_until_ready(out)
    assert out.shape == (N, 2 * num_features)

    # Reference in float64 on host (avoids TPU matmul precision in the baseline).
    x64 = np.asarray(x, dtype=np.float64)
    B64 = np.asarray(B, dtype=np.float64)
    proj_ref = 2.0 * np.pi * (x64 @ B64.T)
    ref = np.concatenate([np.sin(proj_ref), np.cos(proj_ref)], axis=-1)
    np.testing.assert_allclose(np.asarray(out), ref, atol=2e-3, rtol=2e-3)

    # Second config: narrow feature count (2F = 64 < 128) and default tile,
    # checks the non-lane-dense / single-step path is still correct.
    F2, N2 = 32, 40
    B2 = jax.random.normal(jax.random.PRNGKey(1), (F2, input_dim), dtype=jnp.float32) * scale
    x2 = jax.random.normal(jax.random.PRNGKey(2), (N2, input_dim), dtype=jnp.float32)
    out2 = jax.block_until_ready(fourier_features(x2, B2))
    proj2 = 2.0 * np.pi * (np.asarray(x2, np.float64) @ np.asarray(B2, np.float64).T)
    ref2 = np.concatenate([np.sin(proj2), np.cos(proj2)], axis=-1)
    np.testing.assert_allclose(np.asarray(out2), ref2, atol=2e-3, rtol=2e-3)

    print("KERNEL_OK")
</pallas_src>

<mosaic_0001>
module attributes {stable_mosaic.version = 11 : i64} {
  func.func @_fourier_kernel(%arg0: i32, %arg1: memref<64x4xf32, #tpu.memory_space<vmem>>, %arg2: memref<4x64xf32, #tpu.memory_space<vmem>>, %arg3: memref<64x128xf32, #tpu.memory_space<vmem>>) attributes {dimension_semantics = [#tpu.dimension_semantics<parallel>], iteration_bounds = array<i64: 4>, scalar_prefetch = 0 : i64, scratch_operands = 0 : i64, tpu.core_type = #tpu.core_type<tc>, window_params = [{transform_indices = @transform_0, window_bounds = array<i64: 64, 4>}, {pipeline_mode = #tpu.pipeline_mode<synchronous>, transform_indices = @transform_1, window_bounds = array<i64: 4, 64>}, {transform_indices = @transform_2, window_bounds = array<i64: 64, 128>}]} {
    %c0 = arith.constant 0 : index
    %c0_0 = arith.constant 0 : index
    %0 = vector.load %arg1[%c0, %c0_0] : memref<64x4xf32, #tpu.memory_space<vmem>>, vector<64x4xf32>
    %c0_1 = arith.constant 0 : index
    %c0_2 = arith.constant 0 : index
    %1 = vector.load %arg2[%c0_1, %c0_2] : memref<4x64xf32, #tpu.memory_space<vmem>>, vector<4x64xf32>
    %2 = vector.extract_strided_slice %0 {offsets = [0, 0], sizes = [64, 1], strides = [1, 1]} : vector<64x4xf32> to vector<64x1xf32>
    %3 = vector.extract_strided_slice %1 {offsets = [0, 0], sizes = [1, 64], strides = [1, 1]} : vector<4x64xf32> to vector<1x64xf32>
    %4 = vector.broadcast %2 : vector<64x1xf32> to vector<64x64xf32>
    %5 = vector.broadcast %3 : vector<1x64xf32> to vector<64x64xf32>
    %6 = arith.mulf %4, %5 : vector<64x64xf32>
    %7 = vector.extract_strided_slice %0 {offsets = [0, 1], sizes = [64, 1], strides = [1, 1]} : vector<64x4xf32> to vector<64x1xf32>
    %8 = vector.extract_strided_slice %1 {offsets = [1, 0], sizes = [1, 64], strides = [1, 1]} : vector<4x64xf32> to vector<1x64xf32>
    %9 = vector.broadcast %7 : vector<64x1xf32> to vector<64x64xf32>
    %10 = vector.broadcast %8 : vector<1x64xf32> to vector<64x64xf32>
    %11 = arith.mulf %9, %10 : vector<64x64xf32>
    %12 = arith.addf %6, %11 : vector<64x64xf32>
    %13 = vector.extract_strided_slice %0 {offsets = [0, 2], sizes = [64, 1], strides = [1, 1]} : vector<64x4xf32> to vector<64x1xf32>
    %14 = vector.extract_strided_slice %1 {offsets = [2, 0], sizes = [1, 64], strides = [1, 1]} : vector<4x64xf32> to vector<1x64xf32>
    %15 = vector.broadcast %13 : vector<64x1xf32> to vector<64x64xf32>
    %16 = vector.broadcast %14 : vector<1x64xf32> to vector<64x64xf32>
    %17 = arith.mulf %15, %16 : vector<64x64xf32>
    %18 = arith.addf %12, %17 : vector<64x64xf32>
    %19 = vector.extract_strided_slice %0 {offsets = [0, 3], sizes = [64, 1], strides = [1, 1]} : vector<64x4xf32> to vector<64x1xf32>
    %20 = vector.extract_strided_slice %1 {offsets = [3, 0], sizes = [1, 64], strides = [1, 1]} : vector<4x64xf32> to vector<1x64xf32>
    %21 = vector.broadcast %19 : vector<64x1xf32> to vector<64x64xf32>
    %22 = vector.broadcast %20 : vector<1x64xf32> to vector<64x64xf32>
    %23 = arith.mulf %21, %22 : vector<64x64xf32>
    %24 = arith.addf %18, %23 : vector<64x64xf32>
    %25 = math.sin %24 : vector<64x64xf32>
    %c0_3 = arith.constant 0 : index
    %c0_4 = arith.constant 0 : index
    %26 = vector.load %arg3[%c0_3, %c0_4] : memref<64x128xf32, #tpu.memory_space<vmem>>, vector<64x64xf32>
    tpu.vector_store %arg3[%c0_3, %c0_4], %25 {strides = array<i32>} : memref<64x128xf32, #tpu.memory_space<vmem>>, vector<64x64xf32>,
    %27 = math.cos %24 : vector<64x64xf32>
    %c0_5 = arith.constant 0 : index
    %c64 = arith.constant 64 : index
    %28 = vector.load %arg3[%c0_5, %c64] : memref<64x128xf32, #tpu.memory_space<vmem>>, vector<64x64xf32>
    tpu.vector_store %arg3[%c0_5, %c64], %27 {strides = array<i32>} : memref<64x128xf32, #tpu.memory_space<vmem>>, vector<64x64xf32>,
    return
  }
  func.func @transform_0(%arg0: i32) -> (i32, i32) {
    %c0_i32 = arith.constant 0 : i32
    %c0_i32_0 = arith.constant 0 : i32
    return %arg0, %c0_i32 : i32, i32
  }
  func.func @transform_1(%arg0: i32) -> (i32, i32) {
    %c0_i32 = arith.constant 0 : i32
    %c0_i32_0 = arith.constant 0 : i32
    %c0_i32_1 = arith.constant 0 : i32
    return %c0_i32, %c0_i32_0 : i32, i32
  }
  func.func @transform_2(%arg0: i32) -> (i32, i32) {
    %c0_i32 = arith.constant 0 : i32
    %c0_i32_0 = arith.constant 0 : i32
    return %arg0, %c0_i32 : i32, i32
  }
}

</mosaic_0001>

<llo_original>
// kernel: tpu_custom_call.1
$region0: #{tpu_custom_call.1}
  #allocation0 [shape = 'u32[]', space=smem, size = 0x4, offset = 0x4, fixed_abs, tag = 'smem constant byte address 0x4 - core index']
  #allocation1 [shape = 'u32[144,128]{1,0:T(1,128)}', space=vmem, size = 0x12000, scoped, tag = 'internal scratch']
  %s0 = inlined_call_operand.vmem [shape: f32[256,4], index: 0, kind: input, shape index: {}]
  %s1 = inlined_call_operand.vmem [shape: f32[4,64], index: 1, kind: input, shape index: {}]
  %s2 = inlined_call_operand.hbm [shape: f32[256,128], index: 2, kind: output, shape index: {}]
  %s3 = sld [smem:[#allocation0]]
  $region41: #{tpu_custom_call.1} parent=0
    _
  %s5 = ssub.s32 1, %s3
  %s6 = scalar_select 0, %s5, %s3
  $region1: #{tpu_custom_call.1} parent=0
    #allocation2 [shape = 'u8[65536]{0}', space=vmem, size = 0x10000, scoped, tag = 'output window, operand 0']
    #allocation3 [shape = 's32[2]{0}', space=sflag, size = 0x8, scoped, tag = 'scoped memory for tpu_custom_call.1']
    %7 = vsyncpa [#allocation3], 0
    %s8 = scalar_lea.sflag [#allocation3], 1
    %9 = vsyncpa %s8, 0
    loop: start=0, step=1, limit=6
    $region2: #{tpu_custom_call.1} parent=1 // loop_pre_header
      _
    $region3: #{tpu_custom_call.1} parent=1 // loop_header
      %s11 = sphi 0, %s15
      %p12 = scmp.ge.s32.totalorder %s11, 6
      %s21 = sphi 0, %s23
      %s24 = sphi 0, %s21
      %s25 = sphi 0, %s24
      %s41 = sphi 0, %s25
      %s45 = sphi 0, %s45
      %s47 = sphi 0, %s45
      %s48 = sphi 0, %s47
      %s62 = sphi 0, %s48
      %s68 = sphi 0, %s70
      %s71 = sphi 0, %s68
      %s72 = sphi 0, %s71
      %s88 = sphi 0, %s72
    $region4: #{tpu_custom_call.1} parent=1 // loop_header_branch
      %14 = sbr.rel (%p12) target = $region8
    $region5: #{tpu_custom_call.1} parent=1 // loop_body
      %s16 = ssub.s32 %s11, 1
      %s17 = ssub.s32 %s11, 2
      %s18 = sadd.s32 %s11, 1
      %s19 = ssub.s32 %s11, %s18
      %p20 = scmp.eq.s32.totalorder %s19, 0
      %s22 = sadd.s32 %s21, 1
      %s23 = scalar_select %p20, %s21, %s22
      %p26 = pneg %p20
      %p27 = scmp.eq.s32.totalorder %s11, 3
      %p28 = por %p26, %p27
      %p29 = scmp.ne.s32.totalorder %s21, %s24
      %p30 = scmp.eq.s32.totalorder %s11, 0
      %p31 = por %p29, %p30
      %p32 = scmp.ne.s32.totalorder %s21, %s24
      %p33 = scmp.eq.s32.totalorder %s16, 3
      %p34 = por %p32, %p33
      %p35 = scmp.ne.s32.totalorder %s24, %s25
      %p36 = scmp.eq.s32.totalorder %s16, 0
      %p37 = por %p35, %p36
      %p38 = scmp.ne.s32.totalorder %s24, %s25
      %p39 = scmp.eq.s32.totalorder %s17, 3
      %p40 = por %p38, %p39
      %p42 = scmp.ne.s32.totalorder %s25, %s41
      %p43 = scmp.eq.s32.totalorder %s17, 0
      %p44 = por %p42, %p43
      %s46 = sadd.s32 %s45, 1
      %p49 = scmp.eq.s32.totalorder %s11, 3
      %p50 = scmp.ne.s32.totalorder %s45, %s47
      %p51 = scmp.eq.s32.totalorder %s11, 0
      %p52 = por %p50, %p51
      %p53 = scmp.ne.s32.totalorder %s45, %s47
      %p54 = scmp.eq.s32.totalorder %s16, 3
      %p55 = por %p53, %p54
      %p56 = scmp.ne.s32.totalorder %s47, %s48
      %p57 = scmp.eq.s32.totalorder %s16, 0
      %p58 = por %p56, %p57
      %p59 = scmp.ne.s32.totalorder %s47, %s48
      %p60 = scmp.eq.s32.totalorder %s17, 3
      %p61 = por %p59, %p60
      %p63 = scmp.ne.s32.totalorder %s48, %s62
      %p64 = scmp.eq.s32.totalorder %s17, 0
      %p65 = por %p63, %p64
      %s66 = ssub.s32 %s11, %s18
      %p67 = scmp.eq.s32.totalorder %s66, 0
      %s69 = sadd.s32 %s68, 1
      %s70 = scalar_select %p67, %s68, %s69
      %p73 = pneg %p67
      %p74 = scmp.eq.s32.totalorder %s11, 3
      %p75 = por %p73, %p74
      %p76 = scmp.ne.s32.totalorder %s68, %s71
      %p77 = scmp.eq.s32.totalorder %s11, 0
      %p78 = por %p76, %p77
      %p79 = scmp.ne.s32.totalorder %s68, %s71
      %p80 = scmp.eq.s32.totalorder %s16, 3
      %p81 = por %p79, %p80
      %p82 = scmp.ne.s32.totalorder %s71, %s72
      %p83 = scmp.eq.s32.totalorder %s16, 0
      %p84 = por %p82, %p83
      %p85 = scmp.ne.s32.totalorder %s71, %s72
      %p86 = scmp.eq.s32.totalorder %s17, 3
      %p87 = por %p85, %p86
      %p89 = scmp.ne.s32.totalorder %s72, %s88
      %p90 = scmp.eq.s32.totalorder %s17, 0
      %p91 = por %p89, %p90
      %p92 = scmp.le.s32.totalorder 1, %s11
      %p93 = scmp.lt.s32.totalorder %s11, 5
      %p94 = pnand %p92, %p93
      %p95 = pneg %p94
      // Predicated region
      $region9: #{tpu_custom_call.1} parent=5 // pred_check
        _
      $region10: #{tpu_custom_call.1} parent=5 // pred_check_branch
        %97 = sbr.rel (%p94) target = $region12
      $region11: #{tpu_custom_call.1} parent=5 // pred_region
        %s98 = ssub.s32 %s11, 1
        // Predicated region
        $region13: #{tpu_custom_call.1} parent=11 // pred_check
          %p99 = pneg %p58
        $region14: #{tpu_custom_call.1} parent=11 // pred_check_branch
          %101 = sbr.rel (%p99) target = $region16
        $region15: #{tpu_custom_call.1} parent=11 // pred_region
          _
        $region16: #{tpu_custom_call.1} parent=11 // pred_fallthru
          _
      $region12: #{tpu_custom_call.1} parent=5 // pred_fallthru
        _
      %p102 = scmp.lt.s32.totalorder %s11, 4
      // Predicated region
      $region17: #{tpu_custom_call.1} parent=5 // pred_check
        %p103 = pneg %p102
      $region18: #{tpu_custom_call.1} parent=5 // pred_check_branch
        %105 = sbr.rel (%p103) target = $region20
      $region19: #{tpu_custom_call.1} parent=5 // pred_region
        // Predicated region
        $region21: #{tpu_custom_call.1} parent=19 // pred_check
          %p106 = pneg %p31
        $region22: #{tpu_custom_call.1} parent=19 // pred_check_branch
          %108 = sbr.rel (%p106) target = $region24
        $region23: #{tpu_custom_call.1} parent=19 // pred_region
          %s109 = smul.u32 8, %s11
          %p110 = scmp.lt.s32.totalorder %s109, 31
          %s111 = scalar_select %p110, %s109, 31
          %s112 = smul.addr %s111, 8
          %s113 = scalar_lea.vmem %s0, %s112
          %s114 = smul.u32 8, %s11
        $region24: #{tpu_custom_call.1} parent=19 // pred_fallthru
          _
      $region20: #{tpu_custom_call.1} parent=5 // pred_fallthru
        _
      %p115 = scmp.le.s32.totalorder 1, %s11
      %p116 = scmp.lt.s32.totalorder %s11, 5
      %p117 = pnand %p115, %p116
      %p118 = pneg %p117
      // Predicated region
      $region25: #{tpu_custom_call.1} parent=5 // pred_check
        _
      $region26: #{tpu_custom_call.1} parent=5 // pred_check_branch
        %120 = sbr.rel (%p117) target = $region28
      $region27: #{tpu_custom_call.1} parent=5 // pred_region
        %s121 = ssub.s32 %s11, 1
        %s122 = smul.u32 8, %s16
        %p123 = scmp.lt.s32.totalorder %s122, 31
        %s124 = scalar_select %p123, %s122, 31
        %s125 = smul.addr %s124, 8
        %s126 = scalar_lea.vmem %s0, %s125
        %p127 = pneg %p37
        %p128 = pneg %p34
        %p129 = pneg %p58
        %p130 = pneg %p55
        %p131 = pneg %p84
        %p132 = pneg %p81
        %s133 = sand.u32 %s71, 1
        %s134 = scalar_lea.sflag [#allocation3], %s133
        %s135 = sand.u32 %s71, 1
        %s136 = smul.addr %s135, 64
        %s137 = scalar_lea.vmem [#allocation2], %s136
        %s138 = smul.u32 8, %s16
        %p139 = scmp.lt.s32.totalorder %s138, 31
        %s140 = scalar_select %p139, %s138, 31
        %s141 = smul.addr %s140, 8
        %s142 = scalar_lea.vmem %s0, %s141
        %s143 = smul.u32 8, %s16
        %s144 = smul.u32 8, %s16
        %v145 = vld [vmem:[%s142] sm:$0xff]
        %v146 = vld [vmem:[%s142 + $0x8] sm:$0xff]
        %v147 = vld [vmem:[%s142 + $0x10] sm:$0xff]
        %v148 = vld [vmem:[%s142 + $0x18] sm:$0xff]
        %v149 = vld [vmem:[%s142 + $0x20] sm:$0xff]
        %v150 = vld [vmem:[%s142 + $0x28] sm:$0xff]
        %v151 = vld [vmem:[%s142 + $0x30] sm:$0xff]
        %v152 = vld [vmem:[%s142 + $0x38] sm:$0xff]
        %v153 = vld [vmem:[%s1] sm:$0xf]
        %155 = vset.pattern.permute.xlu0 0
        %156 = vperm.xlu0 %155, %v145
        %v157 = vpop.permute.xlu0 %156
        %160 = vset.pattern.permute.xlu0 0
        %161 = vperm.xlu0 %160, %v146
        %v162 = vpop.permute.xlu0 %161
        %165 = vset.pattern.permute.xlu0 0
        %166 = vperm.xlu0 %165, %v147
        %v167 = vpop.permute.xlu0 %166
        %170 = vset.pattern.permute.xlu0 0
        %171 = vperm.xlu0 %170, %v148
        %v172 = vpop.permute.xlu0 %171
        %175 = vset.pattern.permute.xlu0 0
        %176 = vperm.xlu0 %175, %v149
        %v177 = vpop.permute.xlu0 %176
        %180 = vset.pattern.permute.xlu0 0
        %181 = vperm.xlu0 %180, %v150
        %v182 = vpop.permute.xlu0 %181
        %185 = vset.pattern.permute.xlu0 0
        %186 = vperm.xlu0 %185, %v151
        %v187 = vpop.permute.xlu0 %186
        %190 = vset.pattern.permute.xlu0 0
        %191 = vperm.xlu0 %190, %v152
        %v192 = vpop.permute.xlu0 %191
        %v194 = vlaneseq
        %v195 = vshrl.u32 %v194, 7
        %v196 = vsub.s32 0, %v195
        %v197 = vrot.slane %v153, %v196
        %v198 = vmul.f32 %v157, %v197
        %v199 = vmul.f32 %v162, %v197
        %v200 = vmul.f32 %v167, %v197
        %v201 = vmul.f32 %v172, %v197
        %v202 = vmul.f32 %v177, %v197
        %v203 = vmul.f32 %v182, %v197
        %v204 = vmul.f32 %v187, %v197
        %v205 = vmul.f32 %v192, %v197
        %206 = vset.pattern.permute.xlu0 1
        %207 = vperm.xlu0 %206, %v145
        %v208 = vpop.permute.xlu0 %207
        %210 = vset.pattern.permute.xlu0 1
        %211 = vperm.xlu0 %210, %v146
        %v212 = vpop.permute.xlu0 %211
        %214 = vset.pattern.permute.xlu0 1
        %215 = vperm.xlu0 %214, %v147
        %v216 = vpop.permute.xlu0 %215
        %218 = vset.pattern.permute.xlu0 1
        %219 = vperm.xlu0 %218, %v148
        %v220 = vpop.permute.xlu0 %219
        %222 = vset.pattern.permute.xlu0 1
        %223 = vperm.xlu0 %222, %v149
        %v224 = vpop.permute.xlu0 %223
        %226 = vset.pattern.permute.xlu0 1
        %227 = vperm.xlu0 %226, %v150
        %v228 = vpop.permute.xlu0 %227
        %230 = vset.pattern.permute.xlu0 1
        %231 = vperm.xlu0 %230, %v151
        %v232 = vpop.permute.xlu0 %231
        %234 = vset.pattern.permute.xlu0 1
        %235 = vperm.xlu0 %234, %v152
        %v236 = vpop.permute.xlu0 %235
        %v238 = vlaneseq
        %v239 = vshrl.u32 %v238, 7
        %v240 = vsub.s32 1, %v239
        %v241 = vrot.slane %v153, %v240
        %v242 = vmul.f32 %v208, %v241
        %v243 = vmul.f32 %v212, %v241
        %v244 = vmul.f32 %v216, %v241
        %v245 = vmul.f32 %v220, %v241
        %v246 = vmul.f32 %v224, %v241
        %v247 = vmul.f32 %v228, %v241
        %v248 = vmul.f32 %v232, %v241
        %v249 = vmul.f32 %v236, %v241
        %v250 = vadd.f32 %v198, %v242
        %v251 = vadd.f32 %v199, %v243
        %v252 = vadd.f32 %v200, %v244
        %v253 = vadd.f32 %v201, %v245
        %v254 = vadd.f32 %v202, %v246
        %v255 = vadd.f32 %v203, %v247
        %v256 = vadd.f32 %v204, %v248
        %v257 = vadd.f32 %v205, %v249
        %258 = vset.pattern.permute.xlu0 2
        %259 = vperm.xlu0 %258, %v145
        %v260 = vpop.permute.xlu0 %259
        %262 = vset.pattern.permute.xlu0 2
        %263 = vperm.xlu0 %262, %v146
        %v264 = vpop.permute.xlu0 %263
        %266 = vset.pattern.permute.xlu0 2
        %267 = vperm.xlu0 %266, %v147
        %v268 = vpop.permute.xlu0 %267
        %270 = vset.pattern.permute.xlu0 2
        %271 = vperm.xlu0 %270, %v148
        %v272 = vpop.permute.xlu0 %271
        %274 = vset.pattern.permute.xlu0 2
        %275 = vperm.xlu0 %274, %v149
        %v276 = vpop.permute.xlu0 %275
        %278 = vset.pattern.permute.xlu0 2
        %279 = vperm.xlu0 %278, %v150
        %v280 = vpop.permute.xlu0 %279
        %282 = vset.pattern.permute.xlu0 2
        %283 = vperm.xlu0 %282, %v151
        %v284 = vpop.permute.xlu0 %283
        %286 = vset.pattern.permute.xlu0 2
        %287 = vperm.xlu0 %286, %v152
        %v288 = vpop.permute.xlu0 %287
        %v290 = vlaneseq
        %v291 = vshrl.u32 %v290, 7
        %v292 = vsub.s32 2, %v291
        %v293 = vrot.slane %v153, %v292
        %v294 = vmul.f32 %v260, %v293
        %v295 = vmul.f32 %v264, %v293
        %v296 = vmul.f32 %v268, %v293
        %v297 = vmul.f32 %v272, %v293
        %v298 = vmul.f32 %v276, %v293
        %v299 = vmul.f32 %v280, %v293
        %v300 = vmul.f32 %v284, %v293
        %v301 = vmul.f32 %v288, %v293
        %v302 = vadd.f32 %v250, %v294
        %v303 = vadd.f32 %v251, %v295
        %v304 = vadd.f32 %v252, %v296
        %v305 = vadd.f32 %v253, %v297
        %v306 = vadd.f32 %v254, %v298
        %v307 = vadd.f32 %v255, %v299
        %v308 = vadd.f32 %v256, %v300
        %v309 = vadd.f32 %v257, %v301
        %310 = vset.pattern.permute.xlu0 3
        %311 = vperm.xlu0 %310, %v145
        %v312 = vpop.permute.xlu0 %311
        %314 = vset.pattern.permute.xlu0 3
        %315 = vperm.xlu0 %314, %v146
        %v316 = vpop.permute.xlu0 %315
        %318 = vset.pattern.permute.xlu0 3
        %319 = vperm.xlu0 %318, %v147
        %v320 = vpop.permute.xlu0 %319
        %322 = vset.pattern.permute.xlu0 3
        %323 = vperm.xlu0 %322, %v148
        %v324 = vpop.permute.xlu0 %323
        %326 = vset.pattern.permute.xlu0 3
        %327 = vperm.xlu0 %326, %v149
        %v328 = vpop.permute.xlu0 %327
        %330 = vset.pattern.permute.xlu0 3
        %331 = vperm.xlu0 %330, %v150
        %v332 = vpop.permute.xlu0 %331
        %334 = vset.pattern.permute.xlu0 3
        %335 = vperm.xlu0 %334, %v151
        %v336 = vpop.permute.xlu0 %335
        %338 = vset.pattern.permute.xlu0 3
        %339 = vperm.xlu0 %338, %v152
        %v340 = vpop.permute.xlu0 %339
        %v342 = vlaneseq
        %v343 = vshrl.u32 %v342, 7
        %v344 = vsub.s32 3, %v343
        %v345 = vrot.slane %v153, %v344
        %v346 = vmul.f32 %v312, %v345
        %v347 = vmul.f32 %v316, %v345
        %v348 = vmul.f32 %v320, %v345
        %v349 = vmul.f32 %v324, %v345
        %v350 = vmul.f32 %v328, %v345
        %v351 = vmul.f32 %v332, %v345
        %v352 = vmul.f32 %v336, %v345
        %v353 = vmul.f32 %v340, %v345
        %v354 = vadd.f32 %v302, %v346
        %v355 = vadd.f32 %v303, %v347
        %v356 = vadd.f32 %v304, %v348
        %v357 = vadd.f32 %v305, %v349
        %v358 = vadd.f32 %v306, %v350
        %v359 = vadd.f32 %v307, %v351
        %v360 = vadd.f32 %v308, %v352
        %v361 = vadd.f32 %v309, %v353
        %v362 = vand.u32 2147483647, %v354
        %vm363 = vcmp.le.f32.partialorder %v362, 0.7853982
        %vm364 = vcmp.lt.s32.totalorder %v354, 0
        %v365 = vand.u32 %v354, 2139095040
        %v366 = vshrl.u32 %v365, 23
        %v367 = vsub.s32 %v366, 127
        %v368 = vand.u32 2147483647, %v354
        %v369 = vand.u32 %v368, 8388607
        %v370 = vor.u32 %v369, 8388608
        %v371 = vsub.s32 0, %v370
        %v372 = vadd.s32 %v367, 1
        %vm373 = vcmp.gt.s32.totalorder %v372, 0
        %v374 = vsel %vm373, %v372, 0
        %v375 = vshrl.u32 %v374, 5
        %v376 = vand.u32 %v374, 31
        %v377 = vsub.s32 32, %v376
        %v378 = vshrl.u32 683565275, %v377
        %v379 = vshll.u32 683565275, %v376
        %v380 = vshrl.u32 2475754826, %v377
        %v381 = vor.u32 %v379, %v380
        %v382 = vshll.u32 2475754826, %v376
        %v383 = vshrl.u32 2131351028, %v377
        %v384 = vor.u32 %v382, %v383
        %v385 = vshll.u32 2131351028, %v376
        %v386 = vshrl.u32 2102212464, %v377
        %v387 = vor.u32 %v385, %v386
        %v388 = vshll.u32 2102212464, %v376
        %v389 = vshrl.u32 920167782, %v377
        %v390 = vor.u32 %v388, %v389
        %v391 = vshll.u32 920167782, %v376
        %v392 = vshrl.u32 1326507024, %v377
        %v393 = vor.u32 %v391, %v392
        %vm394 = vcmp.lt.s32.totalorder %v375, 1
        %vm395 = vcmp.lt.s32.totalorder %v375, 2
        %vm396 = vcmp.lt.s32.totalorder %v375, 3
        %vm397 = vcmp.lt.s32.totalorder %v375, 4
        %v398 = vsel %vm394, %v378, %v381
        %v399 = vsel %vm397, %v387, 2102212464
        %v400 = vsel %vm396, %v384, %v399
        %v401 = vsel %vm395, %v398, %v400
        %v402 = vsel %vm394, %v381, %v384
        %v403 = vsel %vm397, %v390, 920167782
        %v404 = vsel %vm396, %v387, %v403
        %v405 = vsel %vm395, %v402, %v404
        %v406 = vsel %vm394, %v384, %v387
        %v407 = vsel %vm397, %v393, 1326507024
        %v408 = vsel %vm396, %v390, %v407
        %v409 = vsel %vm395, %v406, %v408
        %v410 = vshll.u32 %v370, 8
        %v411 = vmul.u32.u64.compose %v410, %v409
        %v412 = vextract.low.u32 %v411
        %v413 = vextract.high.u32 %v411
        %v414 = vmul.u32.u64.compose %v410, %v405
        %v415 = vextract.low.u32 %v414
        %v416 = vextract.high.u32 %v414
        %v417 = vmul.u32 %v410, %v401
        %v418 = vadd.s32 %v413, %v415
        %vm419 = vc.u32 %v413, %v415
        %v420 = vadd.s32 %v416, 1
        %v421 = vsel %vm419, %v420, %v416
        %v422 = vadd.s32 %v417, %v421
        %v423 = vadd.s32 %v422, 536870912
        %v424 = vshrl.u32 %v423, 30
        %v425 = vshll.u32 %v424, 30
        %v426 = vsub.s32 %v422, %v425
        %vm427 = vcmp.lt.s32.totalorder %v426, 0
        %v428 = vsub.s32 0, %v426
        %v429 = vsel %vm427, %v428, %v426
        %v430 = vclz %v429
        %v431 = vsub.s32 %v430, 2
        %vm432 = vcmp.gt.s32.totalorder 0, %v431
        %v433 = vsel %vm432, 0, %v431
        %v434 = vsub.s32 32, %v433
        %v435 = vshll.u32 %v426, %v433
        %v436 = vshrl.u32 %v418, %v434
        %v437 = vor.u32 %v435, %v436
        %v438 = vsub.s32 4294967266, %v433
        %v439 = vadd.s32 %v438, 127
        %v440 = vshll.u32 %v439, 23
        %v441 = vor.u32 4788187, %v440
        %v442 = vand.u32 2147483647, %v441
        %v444 = vcvt.s32.f32 %v437
        %v445 = vmul.f32 %v444, %v442
        %v446 = vxor.u32 %v445, 2147483648
        %v447 = vsel %vm364, %v446, %v445
        %v448 = vsub.s32 4, %v424
        %v449 = vsel %vm364, %v448, %v424
        %v450 = vsel %vm363, %v354, %v447
        %v451 = vsel %vm363, 0, %v449
        %v452 = vcosq.f32.pop %v450
        %v453 = vsinq.f32.pop %v450
        %vm454 = vweird.f32 %v354
        %v455 = vadd.s32 %v451, 3
        %v456 = vand.u32 %v455, 3
        %vm457 = vcmp.lt.s32.totalorder %v456, 2
        %vm458 = vcmp.eq.s32.totalorder %v456, 0
        %v459 = vxor.u32 %v453, 2147483648
        %v460 = vsel %vm458, %v452, %v459
        %vm461 = vcmp.eq.s32.totalorder %v456, 2
        %v462 = vxor.u32 %v452, 2147483648
        %v463 = vsel %vm461, %v462, %v453
        %v464 = vsel %vm457, %v460, %v463
        %v465 = vsel %vm454, nan, %v464
        %v466 = vand.u32 2147483647, %v355
        %vm467 = vcmp.le.f32.partialorder %v466, 0.7853982
        %vm468 = vcmp.lt.s32.totalorder %v355, 0
        %v469 = vand.u32 %v355, 2139095040
        %v470 = vshrl.u32 %v469, 23
        %v471 = vsub.s32 %v470, 127
        %v472 = vand.u32 2147483647, %v355
        %v473 = vand.u32 %v472, 8388607
        %v474 = vor.u32 %v473, 8388608
        %v475 = vsub.s32 0, %v474
        %v476 = vadd.s32 %v471, 1
        %vm477 = vcmp.gt.s32.totalorder %v476, 0
        %v478 = vsel %vm477, %v476, 0
        %v479 = vshrl.u32 %v478, 5
        %v480 = vand.u32 %v478, 31
        %v481 = vsub.s32 32, %v480
        %v482 = vshrl.u32 683565275, %v481
        %v483 = vshll.u32 683565275, %v480
        %v484 = vshrl.u32 2475754826, %v481
        %v485 = vor.u32 %v483, %v484
        %v486 = vshll.u32 2475754826, %v480
        %v487 = vshrl.u32 2131351028, %v481
        %v488 = vor.u32 %v486, %v487
        %v489 = vshll.u32 2131351028, %v480
        %v490 = vshrl.u32 2102212464, %v481
        %v491 = vor.u32 %v489, %v490
        %v492 = vshll.u32 2102212464, %v480
        %v493 = vshrl.u32 920167782, %v481
        %v494 = vor.u32 %v492, %v493
        %v495 = vshll.u32 920167782, %v480
        %v496 = vshrl.u32 1326507024, %v481
        %v497 = vor.u32 %v495, %v496
        %vm498 = vcmp.lt.s32.totalorder %v479, 1
        %vm499 = vcmp.lt.s32.totalorder %v479, 2
        %vm500 = vcmp.lt.s32.totalorder %v479, 3
        %vm501 = vcmp.lt.s32.totalorder %v479, 4
        %v502 = vsel %vm498, %v482, %v485
        %v503 = vsel %vm501, %v491, 2102212464
        %v504 = vsel %vm500, %v488, %v503
        %v505 = vsel %vm499, %v502, %v504
        %v506 = vsel %vm498, %v485, %v488
        %v507 = vsel %vm501, %v494, 920167782
        %v508 = vsel %vm500, %v491, %v507
        %v509 = vsel %vm499, %v506, %v508
        %v510 = vsel %vm498, %v488, %v491
        %v511 = vsel %vm501, %v497, 1326507024
        %v512 = vsel %vm500, %v494, %v511
        %v513 = vsel %vm499, %v510, %v512
        %v514 = vshll.u32 %v474, 8
        %v515 = vmul.u32.u64.compose %v514, %v513
        %v516 = vextract.low.u32 %v515
        %v517 = vextract.high.u32 %v515
        %v518 = vmul.u32.u64.compose %v514, %v509
        %v519 = vextract.low.u32 %v518
        %v520 = vextract.high.u32 %v518
        %v521 = vmul.u32 %v514, %v505
        %v522 = vadd.s32 %v517, %v519
        %vm523 = vc.u32 %v517, %v519
        %v524 = vadd.s32 %v520, 1
        %v525 = vsel %vm523, %v524, %v520
        %v526 = vadd.s32 %v521, %v525
        %v527 = vadd.s32 %v526, 536870912
        %v528 = vshrl.u32 %v527, 30
        %v529 = vshll.u32 %v528, 30
        %v530 = vsub.s32 %v526, %v529
        %vm531 = vcmp.lt.s32.totalorder %v530, 0
        %v532 = vsub.s32 0, %v530
        %v533 = vsel %vm531, %v532, %v530
        %v534 = vclz %v533
        %v535 = vsub.s32 %v534, 2
        %vm536 = vcmp.gt.s32.totalorder 0, %v535
        %v537 = vsel %vm536, 0, %v535
        %v538 = vsub.s32 32, %v537
        %v539 = vshll.u32 %v530, %v537
        %v540 = vshrl.u32 %v522, %v538
        %v541 = vor.u32 %v539, %v540
        %v542 = vsub.s32 4294967266, %v537
        %v543 = vadd.s32 %v542, 127
        %v544 = vshll.u32 %v543, 23
        %v545 = vor.u32 4788187, %v544
        %v546 = vand.u32 2147483647, %v545
        %v548 = vcvt.s32.f32 %v541
        %v549 = vmul.f32 %v548, %v546
        %v550 = vxor.u32 %v549, 2147483648
        %v551 = vsel %vm468, %v550, %v549
        %v552 = vsub.s32 4, %v528
        %v553 = vsel %vm468, %v552, %v528
        %v554 = vsel %vm467, %v355, %v551
        %v555 = vsel %vm467, 0, %v553
        %v556 = vcosq.f32.pop %v554
        %v557 = vsinq.f32.pop %v554
        %vm558 = vweird.f32 %v355
        %v559 = vadd.s32 %v555, 3
        %v560 = vand.u32 %v559, 3
        %vm561 = vcmp.lt.s32.totalorder %v560, 2
        %vm562 = vcmp.eq.s32.totalorder %v560, 0
        %v563 = vxor.u32 %v557, 2147483648
        %v564 = vsel %vm562, %v556, %v563
        %vm565 = vcmp.eq.s32.totalorder %v560, 2
        %v566 = vxor.u32 %v556, 2147483648
        %v567 = vsel %vm565, %v566, %v557
        %v568 = vsel %vm561, %v564, %v567
        %v569 = vsel %vm558, nan, %v568
        %v570 = vand.u32 2147483647, %v356
        %vm571 = vcmp.le.f32.partialorder %v570, 0.7853982
        %vm572 = vcmp.lt.s32.totalorder %v356, 0
        %v573 = vand.u32 %v356, 2139095040
        %v574 = vshrl.u32 %v573, 23
        %v575 = vsub.s32 %v574, 127
        %v576 = vand.u32 2147483647, %v356
        %v577 = vand.u32 %v576, 8388607
        %v578 = vor.u32 %v577, 8388608
        %v579 = vsub.s32 0, %v578
        %v580 = vadd.s32 %v575, 1
        %vm581 = vcmp.gt.s32.totalorder %v580, 0
        %v582 = vsel %vm581, %v580, 0
        %v583 = vshrl.u32 %v582, 5
        %v584 = vand.u32 %v582, 31
        %v585 = vsub.s32 32, %v584
        %v586 = vshrl.u32 683565275, %v585
        %v587 = vshll.u32 683565275, %v584
        %v588 = vshrl.u32 2475754826, %v585
        %v589 = vor.u32 %v587, %v588
        %v590 = vshll.u32 2475754826, %v584
        %v591 = vshrl.u32 2131351028, %v585
        %v592 = vor.u32 %v590, %v591
        %v593 = vshll.u32 2131351028, %v584
        %v594 = vshrl.u32 2102212464, %v585
        %v595 = vor.u32 %v593, %v594
        %v596 = vshll.u32 2102212464, %v584
        %v597 = vshrl.u32 920167782, %v585
        %v598 = vor.u32 %v596, %v597
        %v599 = vshll.u32 920167782, %v584
        %v600 = vshrl.u32 1326507024, %v585
        %v601 = vor.u32 %v599, %v600
        %vm602 = vcmp.lt.s32.totalorder %v583, 1
        %vm603 = vcmp.lt.s32.totalorder %v583, 2
        %vm604 = vcmp.lt.s32.totalorder %v583, 3
        %vm605 = vcmp.lt.s32.totalorder %v583, 4
        %v606 = vsel %vm602, %v586, %v589
        %v607 = vsel %vm605, %v595, 2102212464
        %v608 = vsel %vm604, %v592, %v607
        %v609 = vsel %vm603, %v606, %v608
        %v610 = vsel %vm602, %v589, %v592
        %v611 = vsel %vm605, %v598, 920167782
        %v612 = vsel %vm604, %v595, %v611
        %v613 = vsel %vm603, %v610, %v612
        %v614 = vsel %vm602, %v592, %v595
        %v615 = vsel %vm605, %v601, 1326507024
        %v616 = vsel %vm604, %v598, %v615
        %v617 = vsel %vm603, %v614, %v616
        %v618 = vshll.u32 %v578, 8
        %v619 = vmul.u32.u64.compose %v618, %v617
        %v620 = vextract.low.u32 %v619
        %v621 = vextract.high.u32 %v619
        %v622 = vmul.u32.u64.compose %v618, %v613
        %v623 = vextract.low.u32 %v622
        %v624 = vextract.high.u32 %v622
        %v625 = vmul.u32 %v618, %v609
        %v626 = vadd.s32 %v621, %v623
        %vm627 = vc.u32 %v621, %v623
        %v628 = vadd.s32 %v624, 1
        %v629 = vsel %vm627, %v628, %v624
        %v630 = vadd.s32 %v625, %v629
        %v631 = vadd.s32 %v630, 536870912
        %v632 = vshrl.u32 %v631, 30
        %v633 = vshll.u32 %v632, 30
        %v634 = vsub.s32 %v630, %v633
        %vm635 = vcmp.lt.s32.totalorder %v634, 0
        %v636 = vsub.s32 0, %v634
        %v637 = vsel %vm635, %v636, %v634
        %v638 = vclz %v637
        %v639 = vsub.s32 %v638, 2
        %vm640 = vcmp.gt.s32.totalorder 0, %v639
        %v641 = vsel %vm640, 0, %v639
        %v642 = vsub.s32 32, %v641
        %v643 = vshll.u32 %v634, %v641
        %v644 = vshrl.u32 %v626, %v642
        %v645 = vor.u32 %v643, %v644
        %v646 = vsub.s32 4294967266, %v641
        %v647 = vadd.s32 %v646, 127
        %v648 = vshll.u32 %v647, 23
        %v649 = vor.u32 4788187, %v648
        %v650 = vand.u32 2147483647, %v649
        %v652 = vcvt.s32.f32 %v645
        %v653 = vmul.f32 %v652, %v650
        %v654 = vxor.u32 %v653, 2147483648
        %v655 = vsel %vm572, %v654, %v653
        %v656 = vsub.s32 4, %v632
        %v657 = vsel %vm572, %v656, %v632
        %v658 = vsel %vm571, %v356, %v655
        %v659 = vsel %vm571, 0, %v657
        %v660 = vcosq.f32.pop %v658
        %v661 = vsinq.f32.pop %v658
        %vm662 = vweird.f32 %v356
        %v663 = vadd.s32 %v659, 3
        %v664 = vand.u32 %v663, 3
        %vm665 = vcmp.lt.s32.totalorder %v664, 2
        %vm666 = vcmp.eq.s32.totalorder %v664, 0
        %v667 = vxor.u32 %v661, 2147483648
        %v668 = vsel %vm666, %v660, %v667
        %vm669 = vcmp.eq.s32.totalorder %v664, 2
        %v670 = vxor.u32 %v660, 2147483648
        %v671 = vsel %vm669, %v670, %v661
        %v672 = vsel %vm665, %v668, %v671
        %v673 = vsel %vm662, nan, %v672
        %v674 = vand.u32 2147483647, %v357
        %vm675 = vcmp.le.f32.partialorder %v674, 0.7853982
        %vm676 = vcmp.lt.s32.totalorder %v357, 0
        %v677 = vand.u32 %v357, 2139095040
        %v678 = vshrl.u32 %v677, 23
        %v679 = vsub.s32 %v678, 127
        %v680 = vand.u32 2147483647, %v357
        %v681 = vand.u32 %v680, 8388607
        %v682 = vor.u32 %v681, 8388608
        %v683 = vsub.s32 0, %v682
        %v684 = vadd.s32 %v679, 1
        %vm685 = vcmp.gt.s32.totalorder %v684, 0
        %v686 = vsel %vm685, %v684, 0
        %v687 = vshrl.u32 %v686, 5
        %v688 = vand.u32 %v686, 31
        %v689 = vsub.s32 32, %v688
        %v690 = vshrl.u32 683565275, %v689
        %v691 = vshll.u32 683565275, %v688
        %v692 = vshrl.u32 2475754826, %v689
        %v693 = vor.u32 %v691, %v692
        %v694 = vshll.u32 2475754826, %v688
        %v695 = vshrl.u32 2131351028, %v689
        %v696 = vor.u32 %v694, %v695
        %v697 = vshll.u32 2131351028, %v688
        %v698 = vshrl.u32 2102212464, %v689
        %v699 = vor.u32 %v697, %v698
        %v700 = vshll.u32 2102212464, %v688
        %v701 = vshrl.u32 920167782, %v689
        %v702 = vor.u32 %v700, %v701
        %v703 = vshll.u32 920167782, %v688
        %v704 = vshrl.u32 1326507024, %v689
        %v705 = vor.u32 %v703, %v704
        %vm706 = vcmp.lt.s32.totalorder %v687, 1
        %vm707 = vcmp.lt.s32.totalorder %v687, 2
        %vm708 = vcmp.lt.s32.totalorder %v687, 3
        %vm709 = vcmp.lt.s32.totalorder %v687, 4
        %v710 = vsel %vm706, %v690, %v693
        %v711 = vsel %vm709, %v699, 2102212464
        %v712 = vsel %vm708, %v696, %v711
        %v713 = vsel %vm707, %v710, %v712
        %v714 = vsel %vm706, %v693, %v696
        %v715 = vsel %vm709, %v702, 920167782
        %v716 = vsel %vm708, %v699, %v715
        %v717 = vsel %vm707, %v714, %v716
        %v718 = vsel %vm706, %v696, %v699
        %v719 = vsel %vm709, %v705, 1326507024
        %v720 = vsel %vm708, %v702, %v719
        %v721 = vsel %vm707, %v718, %v720
        %v722 = vshll.u32 %v682, 8
        %v723 = vmul.u32.u64.compose %v722, %v721
        %v724 = vextract.low.u32 %v723
        %v725 = vextract.high.u32 %v723
        %v726 = vmul.u32.u64.compose %v722, %v717
        %v727 = vextract.low.u32 %v726
        %v728 = vextract.high.u32 %v726
        %v729 = vmul.u32 %v722, %v713
        %v730 = vadd.s32 %v725, %v727
        %vm731 = vc.u32 %v725, %v727
        %v732 = vadd.s32 %v728, 1
        %v733 = vsel %vm731, %v732, %v728
        %v734 = vadd.s32 %v729, %v733
        %v735 = vadd.s32 %v734, 536870912
        %v736 = vshrl.u32 %v735, 30
        %v737 = vshll.u32 %v736, 30
        %v738 = vsub.s32 %v734, %v737
        %vm739 = vcmp.lt.s32.totalorder %v738, 0
        %v740 = vsub.s32 0, %v738
        %v741 = vsel %vm739, %v740, %v738
        %v742 = vclz %v741
        %v743 = vsub.s32 %v742, 2
        %vm744 = vcmp.gt.s32.totalorder 0, %v743
        %v745 = vsel %vm744, 0, %v743
        %v746 = vsub.s32 32, %v745
        %v747 = vshll.u32 %v738, %v745
        %v748 = vshrl.u32 %v730, %v746
        %v749 = vor.u32 %v747, %v748
        %v750 = vsub.s32 4294967266, %v745
        %v751 = vadd.s32 %v750, 127
        %v752 = vshll.u32 %v751, 23
        %v753 = vor.u32 4788187, %v752
        %v754 = vand.u32 2147483647, %v753
        %v756 = vcvt.s32.f32 %v749
        %v757 = vmul.f32 %v756, %v754
        %v758 = vxor.u32 %v757, 2147483648
        %v759 = vsel %vm676, %v758, %v757
        %v760 = vsub.s32 4, %v736
        %v761 = vsel %vm676, %v760, %v736
        %v762 = vsel %vm675, %v357, %v759
        %v763 = vsel %vm675, 0, %v761
        %v764 = vcosq.f32.pop %v762
        %v765 = vsinq.f32.pop %v762
        %vm766 = vweird.f32 %v357
        %v767 = vadd.s32 %v763, 3
        %v768 = vand.u32 %v767, 3
        %vm769 = vcmp.lt.s32.totalorder %v768, 2
        %vm770 = vcmp.eq.s32.totalorder %v768, 0
        %v771 = vxor.u32 %v765, 2147483648
        %v772 = vsel %vm770, %v764, %v771
        %vm773 = vcmp.eq.s32.totalorder %v768, 2
        %v774 = vxor.u32 %v764, 2147483648
        %v775 = vsel %vm773, %v774, %v765
        %v776 = vsel %vm769, %v772, %v775
        %v777 = vsel %vm766, nan, %v776
        %v778 = vand.u32 2147483647, %v358
        %vm779 = vcmp.le.f32.partialorder %v778, 0.7853982
        %vm780 = vcmp.lt.s32.totalorder %v358, 0
        %v781 = vand.u32 %v358, 2139095040
        %v782 = vshrl.u32 %v781, 23
        %v783 = vsub.s32 %v782, 127
        %v784 = vand.u32 2147483647, %v358
        %v785 = vand.u32 %v784, 8388607
        %v786 = vor.u32 %v785, 8388608
        %v787 = vsub.s32 0, %v786
        %v788 = vadd.s32 %v783, 1
        %vm789 = vcmp.gt.s32.totalorder %v788, 0
        %v790 = vsel %vm789, %v788, 0
        %v791 = vshrl.u32 %v790, 5
        %v792 = vand.u32 %v790, 31
        %v793 = vsub.s32 32, %v792
        %v794 = vshrl.u32 683565275, %v793
        %v795 = vshll.u32 683565275, %v792
        %v796 = vshrl.u32 2475754826, %v793
        %v797 = vor.u32 %v795, %v796
        %v798 = vshll.u32 2475754826, %v792
        %v799 = vshrl.u32 2131351028, %v793
        %v800 = vor.u32 %v798, %v799
        %v801 = vshll.u32 2131351028, %v792
        %v802 = vshrl.u32 2102212464, %v793
        %v803 = vor.u32 %v801, %v802
        %v804 = vshll.u32 2102212464, %v792
        %v805 = vshrl.u32 920167782, %v793
        %v806 = vor.u32 %v804, %v805
        %v807 = vshll.u32 920167782, %v792
        %v808 = vshrl.u32 1326507024, %v793
        %v809 = vor.u32 %v807, %v808
        %vm810 = vcmp.lt.s32.totalorder %v791, 1
        %vm811 = vcmp.lt.s32.totalorder %v791, 2
        %vm812 = vcmp.lt.s32.totalorder %v791, 3
        %vm813 = vcmp.lt.s32.totalorder %v791, 4
        %v814 = vsel %vm810, %v794, %v797
        %v815 = vsel %vm813, %v803, 2102212464
        %v816 = vsel %vm812, %v800, %v815
        %v817 = vsel %vm811, %v814, %v816
        %v818 = vsel %vm810, %v797, %v800
        %v819 = vsel %vm813, %v806, 920167782
        %v820 = vsel %vm812, %v803, %v819
        %v821 = vsel %vm811, %v818, %v820
        %v822 = vsel %vm810, %v800, %v803
        %v823 = vsel %vm813, %v809, 1326507024
        %v824 = vsel %vm812, %v806, %v823
        %v825 = vsel %vm811, %v822, %v824
        %v826 = vshll.u32 %v786, 8
        %v827 = vmul.u32.u64.compose %v826, %v825
        %v828 = vextract.low.u32 %v827
        %v829 = vextract.high.u32 %v827
        %v830 = vmul.u32.u64.compose %v826, %v821
        %v831 = vextract.low.u32 %v830
        %v832 = vextract.high.u32 %v830
        %v833 = vmul.u32 %v826, %v817
        %v834 = vadd.s32 %v829, %v831
        %vm835 = vc.u32 %v829, %v831
        %v836 = vadd.s32 %v832, 1
        %v837 = vsel %vm835, %v836, %v832
        %v838 = vadd.s32 %v833, %v837
        %v839 = vadd.s32 %v838, 536870912
        %v840 = vshrl.u32 %v839, 30
        %v841 = vshll.u32 %v840, 30
        %v842 = vsub.s32 %v838, %v841
        %vm843 = vcmp.lt.s32.totalorder %v842, 0
        %v844 = vsub.s32 0, %v842
        %v845 = vsel %vm843, %v844, %v842
        %v846 = vclz %v845
        %v847 = vsub.s32 %v846, 2
        %vm848 = vcmp.gt.s32.totalorder 0, %v847
        %v849 = vsel %vm848, 0, %v847
        %v850 = vsub.s32 32, %v849
        %v851 = vshll.u32 %v842, %v849
        %v852 = vshrl.u32 %v834, %v850
        %v853 = vor.u32 %v851, %v852
        %v854 = vsub.s32 4294967266, %v849
        %v855 = vadd.s32 %v854, 127
        %v856 = vshll.u32 %v855, 23
        %v857 = vor.u32 4788187, %v856
        %v858 = vand.u32 2147483647, %v857
        %v860 = vcvt.s32.f32 %v853
        %v861 = vmul.f32 %v860, %v858
        %v862 = vxor.u32 %v861, 2147483648
        %v863 = vsel %vm780, %v862, %v861
        %v864 = vsub.s32 4, %v840
        %v865 = vsel %vm780, %v864, %v840
        %v866 = vsel %vm779, %v358, %v863
        %v867 = vsel %vm779, 0, %v865
        %v868 = vcosq.f32.pop %v866
        %v869 = vsinq.f32.pop %v866
        %vm870 = vweird.f32 %v358
        %v871 = vadd.s32 %v867, 3
        %v872 = vand.u32 %v871, 3
        %vm873 = vcmp.lt.s32.totalorder %v872, 2
        %vm874 = vcmp.eq.s32.totalorder %v872, 0
        %v875 = vxor.u32 %v869, 2147483648
        %v876 = vsel %vm874, %v868, %v875
        %vm877 = vcmp.eq.s32.totalorder %v872, 2
        %v878 = vxor.u32 %v868, 2147483648
        %v879 = vsel %vm877, %v878, %v869
        %v880 = vsel %vm873, %v876, %v879
        %v881 = vsel %vm870, nan, %v880
        %v882 = vand.u32 2147483647, %v359
        %vm883 = vcmp.le.f32.partialorder %v882, 0.7853982
        %vm884 = vcmp.lt.s32.totalorder %v359, 0
        %v885 = vand.u32 %v359, 2139095040
        %v886 = vshrl.u32 %v885, 23
        %v887 = vsub.s32 %v886, 127
        %v888 = vand.u32 2147483647, %v359
        %v889 = vand.u32 %v888, 8388607
        %v890 = vor.u32 %v889, 8388608
        %v891 = vsub.s32 0, %v890
        %v892 = vadd.s32 %v887, 1
        %vm893 = vcmp.gt.s32.totalorder %v892, 0
        %v894 = vsel %vm893, %v892, 0
        %v895 = vshrl.u32 %v894, 5
        %v896 = vand.u32 %v894, 31
        %v897 = vsub.s32 32, %v896
        %v898 = vshrl.u32 683565275, %v897
        %v899 = vshll.u32 683565275, %v896
        %v900 = vshrl.u32 2475754826, %v897
        %v901 = vor.u32 %v899, %v900
        %v902 = vshll.u32 2475754826, %v896
        %v903 = vshrl.u32 2131351028, %v897
        %v904 = vor.u32 %v902, %v903
        %v905 = vshll.u32 2131351028, %v896
        %v906 = vshrl.u32 2102212464, %v897
        %v907 = vor.u32 %v905, %v906
        %v908 = vshll.u32 2102212464, %v896
        %v909 = vshrl.u32 920167782, %v897
        %v910 = vor.u32 %v908, %v909
        %v911 = vshll.u32 920167782, %v896
        %v912 = vshrl.u32 1326507024, %v897
        %v913 = vor.u32 %v911, %v912
        %vm914 = vcmp.lt.s32.totalorder %v895, 1
        %vm915 = vcmp.lt.s32.totalorder %v895, 2
        %vm916 = vcmp.lt.s32.totalorder %v895, 3
        %vm917 = vcmp.lt.s32.totalorder %v895, 4
        %v918 = vsel %vm914, %v898, %v901
        %v919 = vsel %vm917, %v907, 2102212464
        %v920 = vsel %vm916, %v904, %v919
        %v921 = vsel %vm915, %v918, %v920
        %v922 = vsel %vm914, %v901, %v904
        %v923 = vsel %vm917, %v910, 920167782
        %v924 = vsel %vm916, %v907, %v923
        %v925 = vsel %vm915, %v922, %v924
        %v926 = vsel %vm914, %v904, %v907
        %v927 = vsel %vm917, %v913, 1326507024
        %v928 = vsel %vm916, %v910, %v927
        %v929 = vsel %vm915, %v926, %v928
        %v930 = vshll.u32 %v890, 8
        %v931 = vmul.u32.u64.compose %v930, %v929
        %v932 = vextract.low.u32 %v931
        %v933 = vextract.high.u32 %v931
        %v934 = vmul.u32.u64.compose %v930, %v925
        %v935 = vextract.low.u32 %v934
        %v936 = vextract.high.u32 %v934
        %v937 = vmul.u32 %v930, %v921
        %v938 = vadd.s32 %v933, %v935
        %vm939 = vc.u32 %v933, %v935
        %v940 = vadd.s32 %v936, 1
        %v941 = vsel %vm939, %v940, %v936
        %v942 = vadd.s32 %v937, %v941
        %v943 = vadd.s32 %v942, 536870912
        %v944 = vshrl.u32 %v943, 30
        %v945 = vshll.u32 %v944, 30
        %v946 = vsub.s32 %v942, %v945
        %vm947 = vcmp.lt.s32.totalorder %v946, 0
        %v948 = vsub.s32 0, %v946
        %v949 = vsel %vm947, %v948, %v946
        %v950 = vclz %v949
        %v951 = vsub.s32 %v950, 2
        %vm952 = vcmp.gt.s32.totalorder 0, %v951
        %v953 = vsel %vm952, 0, %v951
        %v954 = vsub.s32 32, %v953
        %v955 = vshll.u32 %v946, %v953
        %v956 = vshrl.u32 %v938, %v954
        %v957 = vor.u32 %v955, %v956
        %v958 = vsub.s32 4294967266, %v953
        %v959 = vadd.s32 %v958, 127
        %v960 = vshll.u32 %v959, 23
        %v961 = vor.u32 4788187, %v960
        %v962 = vand.u32 2147483647, %v961
        %v964 = vcvt.s32.f32 %v957
        %v965 = vmul.f32 %v964, %v962
        %v966 = vxor.u32 %v965, 2147483648
        %v967 = vsel %vm884, %v966, %v965
        %v968 = vsub.s32 4, %v944
        %v969 = vsel %vm884, %v968, %v944
        %v970 = vsel %vm883, %v359, %v967
        %v971 = vsel %vm883, 0, %v969
        %v972 = vcosq.f32.pop %v970
        %v973 = vsinq.f32.pop %v970
        %vm974 = vweird.f32 %v359
        %v975 = vadd.s32 %v971, 3
        %v976 = vand.u32 %v975, 3
        %vm977 = vcmp.lt.s32.totalorder %v976, 2
        %vm978 = vcmp.eq.s32.totalorder %v976, 0
        %v979 = vxor.u32 %v973, 2147483648
        %v980 = vsel %vm978, %v972, %v979
        %vm981 = vcmp.eq.s32.totalorder %v976, 2
        %v982 = vxor.u32 %v972, 2147483648
        %v983 = vsel %vm981, %v982, %v973
        %v984 = vsel %vm977, %v980, %v983
        %v985 = vsel %vm974, nan, %v984
        %v986 = vand.u32 2147483647, %v360
        %vm987 = vcmp.le.f32.partialorder %v986, 0.7853982
        %vm988 = vcmp.lt.s32.totalorder %v360, 0
        %v989 = vand.u32 %v360, 2139095040
        %v990 = vshrl.u32 %v989, 23
        %v991 = vsub.s32 %v990, 127
        %v992 = vand.u32 2147483647, %v360
        %v993 = vand.u32 %v992, 8388607
        %v994 = vor.u32 %v993, 8388608
        %v995 = vsub.s32 0, %v994
        %v996 = vadd.s32 %v991, 1
        %vm997 = vcmp.gt.s32.totalorder %v996, 0
        %v998 = vsel %vm997, %v996, 0
        %v999 = vshrl.u32 %v998, 5
        %v1000 = vand.u32 %v998, 31
        %v1001 = vsub.s32 32, %v1000
        %v1002 = vshrl.u32 683565275, %v1001
        %v1003 = vshll.u32 683565275, %v1000
        %v1004 = vshrl.u32 2475754826, %v1001
        %v1005 = vor.u32 %v1003, %v1004
        %v1006 = vshll.u32 2475754826, %v1000
        %v1007 = vshrl.u32 2131351028, %v1001
        %v1008 = vor.u32 %v1006, %v1007
        %v1009 = vshll.u32 2131351028, %v1000
        %v1010 = vshrl.u32 2102212464, %v1001
        %v1011 = vor.u32 %v1009, %v1010
        %v1012 = vshll.u32 2102212464, %v1000
        %v1013 = vshrl.u32 920167782, %v1001
        %v1014 = vor.u32 %v1012, %v1013
        %v1015 = vshll.u32 920167782, %v1000
        %v1016 = vshrl.u32 1326507024, %v1001
        %v1017 = vor.u32 %v1015, %v1016
        %vm1018 = vcmp.lt.s32.totalorder %v999, 1
        %vm1019 = vcmp.lt.s32.totalorder %v999, 2
        %vm1020 = vcmp.lt.s32.totalorder %v999, 3
        %vm1021 = vcmp.lt.s32.totalorder %v999, 4
        %v1022 = vsel %vm1018, %v1002, %v1005
        %v1023 = vsel %vm1021, %v1011, 2102212464
        %v1024 = vsel %vm1020, %v1008, %v1023
        %v1025 = vsel %vm1019, %v1022, %v1024
        %v1026 = vsel %vm1018, %v1005, %v1008
        %v1027 = vsel %vm1021, %v1014, 920167782
        %v1028 = vsel %vm1020, %v1011, %v1027
        %v1029 = vsel %vm1019, %v1026, %v1028
        %v1030 = vsel %vm1018, %v1008, %v1011
        %v1031 = vsel %vm1021, %v1017, 1326507024
        %v1032 = vsel %vm1020, %v1014, %v1031
        %v1033 = vsel %vm1019, %v1030, %v1032
        %v1034 = vshll.u32 %v994, 8
        %v1035 = vmul.u32.u64.compose %v1034, %v1033
        %v1036 = vextract.low.u32 %v1035
        %v1037 = vextract.high.u32 %v1035
        %v1038 = vmul.u32.u64.compose %v1034, %v1029
        %v1039 = vextract.low.u32 %v1038
        %v1040 = vextract.high.u32 %v1038
        %v1041 = vmul.u32 %v1034, %v1025
        %v1042 = vadd.s32 %v1037, %v1039
        %vm1043 = vc.u32 %v1037, %v1039
        %v1044 = vadd.s32 %v1040, 1
        %v1045 = vsel %vm1043, %v1044, %v1040
        %v1046 = vadd.s32 %v1041, %v1045
        %v1047 = vadd.s32 %v1046, 536870912
        %v1048 = vshrl.u32 %v1047, 30
        %v1049 = vshll.u32 %v1048, 30
        %v1050 = vsub.s32 %v1046, %v1049
        %vm1051 = vcmp.lt.s32.totalorder %v1050, 0
        %v1052 = vsub.s32 0, %v1050
        %v1053 = vsel %vm1051, %v1052, %v1050
        %v1054 = vclz %v1053
        %v1055 = vsub.s32 %v1054, 2
        %vm1056 = vcmp.gt.s32.totalorder 0, %v1055
        %v1057 = vsel %vm1056, 0, %v1055
        %v1058 = vsub.s32 32, %v1057
        %v1059 = vshll.u32 %v1050, %v1057
        %v1060 = vshrl.u32 %v1042, %v1058
        %v1061 = vor.u32 %v1059, %v1060
        %v1062 = vsub.s32 4294967266, %v1057
        %v1063 = vadd.s32 %v1062, 127
        %v1064 = vshll.u32 %v1063, 23
        %v1065 = vor.u32 4788187, %v1064
        %v1066 = vand.u32 2147483647, %v1065
        %v1068 = vcvt.s32.f32 %v1061
        %v1069 = vmul.f32 %v1068, %v1066
        %v1070 = vxor.u32 %v1069, 2147483648
        %v1071 = vsel %vm988, %v1070, %v1069
        %v1072 = vsub.s32 4, %v1048
        %v1073 = vsel %vm988, %v1072, %v1048
        %v1074 = vsel %vm987, %v360, %v1071
        %v1075 = vsel %vm987, 0, %v1073
        %v1076 = vcosq.f32.pop %v1074
        %v1077 = vsinq.f32.pop %v1074
        %vm1078 = vweird.f32 %v360
        %v1079 = vadd.s32 %v1075, 3
        %v1080 = vand.u32 %v1079, 3
        %vm1081 = vcmp.lt.s32.totalorder %v1080, 2
        %vm1082 = vcmp.eq.s32.totalorder %v1080, 0
        %v1083 = vxor.u32 %v1077, 2147483648
        %v1084 = vsel %vm1082, %v1076, %v1083
        %vm1085 = vcmp.eq.s32.totalorder %v1080, 2
        %v1086 = vxor.u32 %v1076, 2147483648
        %v1087 = vsel %vm1085, %v1086, %v1077
        %v1088 = vsel %vm1081, %v1084, %v1087
        %v1089 = vsel %vm1078, nan, %v1088
        %v1090 = vand.u32 2147483647, %v361
        %vm1091 = vcmp.le.f32.partialorder %v1090, 0.7853982
        %vm1092 = vcmp.lt.s32.totalorder %v361, 0
        %v1093 = vand.u32 %v361, 2139095040
        %v1094 = vshrl.u32 %v1093, 23
        %v1095 = vsub.s32 %v1094, 127
        %v1096 = vand.u32 2147483647, %v361
        %v1097 = vand.u32 %v1096, 8388607
        %v1098 = vor.u32 %v1097, 8388608
        %v1099 = vsub.s32 0, %v1098
        %v1100 = vadd.s32 %v1095, 1
        %vm1101 = vcmp.gt.s32.totalorder %v1100, 0
        %v1102 = vsel %vm1101, %v1100, 0
        %v1103 = vshrl.u32 %v1102, 5
        %v1104 = vand.u32 %v1102, 31
        %v1105 = vsub.s32 32, %v1104
        %v1106 = vshrl.u32 683565275, %v1105
        %v1107 = vshll.u32 683565275, %v1104
        %v1108 = vshrl.u32 2475754826, %v1105
        %v1109 = vor.u32 %v1107, %v1108
        %v1110 = vshll.u32 2475754826, %v1104
        %v1111 = vshrl.u32 2131351028, %v1105
        %v1112 = vor.u32 %v1110, %v1111
        %v1113 = vshll.u32 2131351028, %v1104
        %v1114 = vshrl.u32 2102212464, %v1105
        %v1115 = vor.u32 %v1113, %v1114
        %v1116 = vshll.u32 2102212464, %v1104
        %v1117 = vshrl.u32 920167782, %v1105
        %v1118 = vor.u32 %v1116, %v1117
        %v1119 = vshll.u32 920167782, %v1104
        %v1120 = vshrl.u32 1326507024, %v1105
        %v1121 = vor.u32 %v1119, %v1120
        %vm1122 = vcmp.lt.s32.totalorder %v1103, 1
        %vm1123 = vcmp.lt.s32.totalorder %v1103, 2
        %vm1124 = vcmp.lt.s32.totalorder %v1103, 3
        %vm1125 = vcmp.lt.s32.totalorder %v1103, 4
        %v1126 = vsel %vm1122, %v1106, %v1109
        %v1127 = vsel %vm1125, %v1115, 2102212464
        %v1128 = vsel %vm1124, %v1112, %v1127
        %v1129 = vsel %vm1123, %v1126, %v1128
        %v1130 = vsel %vm1122, %v1109, %v1112
        %v1131 = vsel %vm1125, %v1118, 920167782
        %v1132 = vsel %vm1124, %v1115, %v1131
        %v1133 = vsel %vm1123, %v1130, %v1132
        %v1134 = vsel %vm1122, %v1112, %v1115
        %v1135 = vsel %vm1125, %v1121, 1326507024
        %v1136 = vsel %vm1124, %v1118, %v1135
        %v1137 = vsel %vm1123, %v1134, %v1136
        %v1138 = vshll.u32 %v1098, 8
        %v1139 = vmul.u32.u64.compose %v1138, %v1137
        %v1140 = vextract.low.u32 %v1139
        %v1141 = vextract.high.u32 %v1139
        %v1142 = vmul.u32.u64.compose %v1138, %v1133
        %v1143 = vextract.low.u32 %v1142
        %v1144 = vextract.high.u32 %v1142
        %v1145 = vmul.u32 %v1138, %v1129
        %v1146 = vadd.s32 %v1141, %v1143
        %vm1147 = vc.u32 %v1141, %v1143
        %v1148 = vadd.s32 %v1144, 1
        %v1149 = vsel %vm1147, %v1148, %v1144
        %v1150 = vadd.s32 %v1145, %v1149
        %v1151 = vadd.s32 %v1150, 536870912
        %v1152 = vshrl.u32 %v1151, 30
        %v1153 = vshll.u32 %v1152, 30
        %v1154 = vsub.s32 %v1150, %v1153
        %vm1155 = vcmp.lt.s32.totalorder %v1154, 0
        %v1156 = vsub.s32 0, %v1154
        %v1157 = vsel %vm1155, %v1156, %v1154
        %v1158 = vclz %v1157
        %v1159 = vsub.s32 %v1158, 2
        %vm1160 = vcmp.gt.s32.totalorder 0, %v1159
        %v1161 = vsel %vm1160, 0, %v1159
        %v1162 = vsub.s32 32, %v1161
        %v1163 = vshll.u32 %v1154, %v1161
        %v1164 = vshrl.u32 %v1146, %v1162
        %v1165 = vor.u32 %v1163, %v1164
        %v1166 = vsub.s32 4294967266, %v1161
        %v1167 = vadd.s32 %v1166, 127
        %v1168 = vshll.u32 %v1167, 23
        %v1169 = vor.u32 4788187, %v1168
        %v1170 = vand.u32 2147483647, %v1169
        %v1172 = vcvt.s32.f32 %v1165
        %v1173 = vmul.f32 %v1172, %v1170
        %v1174 = vxor.u32 %v1173, 2147483648
        %v1175 = vsel %vm1092, %v1174, %v1173
        %v1176 = vsub.s32 4, %v1152
        %v1177 = vsel %vm1092, %v1176, %v1152
        %v1178 = vsel %vm1091, %v361, %v1175
        %v1179 = vsel %vm1091, 0, %v1177
        %v1180 = vcosq.f32.pop %v1178
        %v1181 = vsinq.f32.pop %v1178
        %vm1182 = vweird.f32 %v361
        %v1183 = vadd.s32 %v1179, 3
        %v1184 = vand.u32 %v1183, 3
        %vm1185 = vcmp.lt.s32.totalorder %v1184, 2
        %vm1186 = vcmp.eq.s32.totalorder %v1184, 0
        %v1187 = vxor.u32 %v1181, 2147483648
        %v1188 = vsel %vm1186, %v1180, %v1187
        %vm1189 = vcmp.eq.s32.totalorder %v1184, 2
        %v1190 = vxor.u32 %v1180, 2147483648
        %v1191 = vsel %vm1189, %v1190, %v1181
        %v1192 = vsel %vm1185, %v1188, %v1191
        %v1193 = vsel %vm1182, nan, %v1192
        %vm1194 = vcmask 523264
        %1195 = vst.msk [vmem:[%s137] sm:$0xff] %vm1194, %v465
        %1196 = vst.msk [vmem:[%s137 + $0x8] sm:$0xff] %vm1194, %v569
        %1197 = vst.msk [vmem:[%s137 + $0x10] sm:$0xff] %vm1194, %v673
        %1198 = vst.msk [vmem:[%s137 + $0x18] sm:$0xff] %vm1194, %v777
        %1199 = vst.msk [vmem:[%s137 + $0x20] sm:$0xff] %vm1194, %v881
        %1200 = vst.msk [vmem:[%s137 + $0x28] sm:$0xff] %vm1194, %v985
        %1201 = vst.msk [vmem:[%s137 + $0x30] sm:$0xff] %vm1194, %v1089
        %1202 = vst.msk [vmem:[%s137 + $0x38] sm:$0xff] %vm1194, %v1193
        %v1203 = vand.u32 2147483647, %v354
        %vm1204 = vcmp.le.f32.partialorder %v1203, 0.7853982
        %vm1205 = vcmp.lt.s32.totalorder %v354, 0
        %v1206 = vand.u32 %v354, 2139095040
        %v1207 = vshrl.u32 %v1206, 23
        %v1208 = vsub.s32 %v1207, 127
        %v1209 = vand.u32 2147483647, %v354
        %v1210 = vand.u32 %v1209, 8388607
        %v1211 = vor.u32 %v1210, 8388608
        %v1212 = vsub.s32 0, %v1211
        %v1213 = vadd.s32 %v1208, 1
        %vm1214 = vcmp.gt.s32.totalorder %v1213, 0
        %v1215 = vsel %vm1214, %v1213, 0
        %v1216 = vshrl.u32 %v1215, 5
        %v1217 = vand.u32 %v1215, 31
        %v1218 = vsub.s32 32, %v1217
        %v1219 = vshrl.u32 683565275, %v1218
        %v1220 = vshll.u32 683565275, %v1217
        %v1221 = vshrl.u32 2475754826, %v1218
        %v1222 = vor.u32 %v1220, %v1221
        %v1223 = vshll.u32 2475754826, %v1217
        %v1224 = vshrl.u32 2131351028, %v1218
        %v1225 = vor.u32 %v1223, %v1224
        %v1226 = vshll.u32 2131351028, %v1217
        %v1227 = vshrl.u32 2102212464, %v1218
        %v1228 = vor.u32 %v1226, %v1227
        %v1229 = vshll.u32 2102212464, %v1217
        %v1230 = vshrl.u32 920167782, %v1218
        %v1231 = vor.u32 %v1229, %v1230
        %v1232 = vshll.u32 920167782, %v1217
        %v1233 = vshrl.u32 1326507024, %v1218
        %v1234 = vor.u32 %v1232, %v1233
        %vm1235 = vcmp.lt.s32.totalorder %v1216, 1
        %vm1236 = vcmp.lt.s32.totalorder %v1216, 2
        %vm1237 = vcmp.lt.s32.totalorder %v1216, 3
        %vm1238 = vcmp.lt.s32.totalorder %v1216, 4
        %v1239 = vsel %vm1235, %v1219, %v1222
        %v1240 = vsel %vm1238, %v1228, 2102212464
        %v1241 = vsel %vm1237, %v1225, %v1240
        %v1242 = vsel %vm1236, %v1239, %v1241
        %v1243 = vsel %vm1235, %v1222, %v1225
        %v1244 = vsel %vm1238, %v1231, 920167782
        %v1245 = vsel %vm1237, %v1228, %v1244
        %v1246 = vsel %vm1236, %v1243, %v1245
        %v1247 = vsel %vm1235, %v1225, %v1228
        %v1248 = vsel %vm1238, %v1234, 1326507024
        %v1249 = vsel %vm1237, %v1231, %v1248
        %v1250 = vsel %vm1236, %v1247, %v1249
        %v1251 = vshll.u32 %v1211, 8
        %v1252 = vmul.u32.u64.compose %v1251, %v1250
        %v1253 = vextract.low.u32 %v1252
        %v1254 = vextract.high.u32 %v1252
        %v1255 = vmul.u32.u64.compose %v1251, %v1246
        %v1256 = vextract.low.u32 %v1255
        %v1257 = vextract.high.u32 %v1255
        %v1258 = vmul.u32 %v1251, %v1242
        %v1259 = vadd.s32 %v1254, %v1256
        %vm1260 = vc.u32 %v1254, %v1256
        %v1261 = vadd.s32 %v1257, 1
        %v1262 = vsel %vm1260, %v1261, %v1257
        %v1263 = vadd.s32 %v1258, %v1262
        %v1264 = vadd.s32 %v1263, 536870912
        %v1265 = vshrl.u32 %v1264, 30
        %v1266 = vshll.u32 %v1265, 30
        %v1267 = vsub.s32 %v1263, %v1266
        %vm1268 = vcmp.lt.s32.totalorder %v1267, 0
        %v1269 = vsub.s32 0, %v1267
        %v1270 = vsel %vm1268, %v1269, %v1267
        %v1271 = vclz %v1270
        %v1272 = vsub.s32 %v1271, 2
        %vm1273 = vcmp.gt.s32.totalorder 0, %v1272
        %v1274 = vsel %vm1273, 0, %v1272
        %v1275 = vsub.s32 32, %v1274
        %v1276 = vshll.u32 %v1267, %v1274
        %v1277 = vshrl.u32 %v1259, %v1275
        %v1278 = vor.u32 %v1276, %v1277
        %v1279 = vsub.s32 4294967266, %v1274
        %v1280 = vadd.s32 %v1279, 127
        %v1281 = vshll.u32 %v1280, 23
        %v1282 = vor.u32 4788187, %v1281
        %v1283 = vand.u32 2147483647, %v1282
        %v1285 = vcvt.s32.f32 %v1278
        %v1286 = vmul.f32 %v1285, %v1283
        %v1287 = vxor.u32 %v1286, 2147483648
        %v1288 = vsel %vm1205, %v1287, %v1286
        %v1289 = vsub.s32 4, %v1265
        %v1290 = vsel %vm1205, %v1289, %v1265
        %v1291 = vsel %vm1204, %v354, %v1288
        %v1292 = vsel %vm1204, 0, %v1290
        %v1293 = vcosq.f32.pop %v1291
        %v1294 = vsinq.f32.pop %v1291
        %vm1295 = vweird.f32 %v354
        %v1296 = vand.u32 %v1292, 3
        %vm1297 = vcmp.lt.s32.totalorder %v1296, 2
        %vm1298 = vcmp.eq.s32.totalorder %v1296, 0
        %v1299 = vxor.u32 %v1294, 2147483648
        %v1300 = vsel %vm1298, %v1293, %v1299
        %vm1301 = vcmp.eq.s32.totalorder %v1296, 2
        %v1302 = vxor.u32 %v1293, 2147483648
        %v1303 = vsel %vm1301, %v1302, %v1294
        %v1304 = vsel %vm1297, %v1300, %v1303
        %v1305 = vsel %vm1295, nan, %v1304
        %v1306 = vand.u32 2147483647, %v355
        %vm1307 = vcmp.le.f32.partialorder %v1306, 0.7853982
        %vm1308 = vcmp.lt.s32.totalorder %v355, 0
        %v1309 = vand.u32 %v355, 2139095040
        %v1310 = vshrl.u32 %v1309, 23
        %v1311 = vsub.s32 %v1310, 127
        %v1312 = vand.u32 2147483647, %v355
        %v1313 = vand.u32 %v1312, 8388607
        %v1314 = vor.u32 %v1313, 8388608
        %v1315 = vsub.s32 0, %v1314
        %v1316 = vadd.s32 %v1311, 1
        %vm1317 = vcmp.gt.s32.totalorder %v1316, 0
        %v1318 = vsel %vm1317, %v1316, 0
        %v1319 = vshrl.u32 %v1318, 5
        %v1320 = vand.u32 %v1318, 31
        %v1321 = vsub.s32 32, %v1320
        %v1322 = vshrl.u32 683565275, %v1321
        %v1323 = vshll.u32 683565275, %v1320
        %v1324 = vshrl.u32 2475754826, %v1321
        %v1325 = vor.u32 %v1323, %v1324
        %v1326 = vshll.u32 2475754826, %v1320
        %v1327 = vshrl.u32 2131351028, %v1321
        %v1328 = vor.u32 %v1326, %v1327
        %v1329 = vshll.u32 2131351028, %v1320
        %v1330 = vshrl.u32 2102212464, %v1321
        %v1331 = vor.u32 %v1329, %v1330
        %v1332 = vshll.u32 2102212464, %v1320
        %v1333 = vshrl.u32 920167782, %v1321
        %v1334 = vor.u32 %v1332, %v1333
        %v1335 = vshll.u32 920167782, %v1320
        %v1336 = vshrl.u32 1326507024, %v1321
        %v1337 = vor.u32 %v1335, %v1336
        %vm1338 = vcmp.lt.s32.totalorder %v1319, 1
        %vm1339 = vcmp.lt.s32.totalorder %v1319, 2
        %vm1340 = vcmp.lt.s32.totalorder %v1319, 3
        %vm1341 = vcmp.lt.s32.totalorder %v1319, 4
        %v1342 = vsel %vm1338, %v1322, %v1325
        %v1343 = vsel %vm1341, %v1331, 2102212464
        %v1344 = vsel %vm1340, %v1328, %v1343
        %v1345 = vsel %vm1339, %v1342, %v1344
        %v1346 = vsel %vm1338, %v1325, %v1328
        %v1347 = vsel %vm1341, %v1334, 920167782
        %v1348 = vsel %vm1340, %v1331, %v1347
        %v1349 = vsel %vm1339, %v1346, %v1348
        %v1350 = vsel %vm1338, %v1328, %v1331
        %v1351 = vsel %vm1341, %v1337, 1326507024
        %v1352 = vsel %vm1340, %v1334, %v1351
        %v1353 = vsel %vm1339, %v1350, %v1352
        %v1354 = vshll.u32 %v1314, 8
        %v1355 = vmul.u32.u64.compose %v1354, %v1353
        %v1356 = vextract.low.u32 %v1355
        %v1357 = vextract.high.u32 %v1355
        %v1358 = vmul.u32.u64.compose %v1354, %v1349
        %v1359 = vextract.low.u32 %v1358
        %v1360 = vextract.high.u32 %v1358
        %v1361 = vmul.u32 %v1354, %v1345
        %v1362 = vadd.s32 %v1357, %v1359
        %vm1363 = vc.u32 %v1357, %v1359
        %v1364 = vadd.s32 %v1360, 1
        %v1365 = vsel %vm1363, %v1364, %v1360
        %v1366 = vadd.s32 %v1361, %v1365
        %v1367 = vadd.s32 %v1366, 536870912
        %v1368 = vshrl.u32 %v1367, 30
        %v1369 = vshll.u32 %v1368, 30
        %v1370 = vsub.s32 %v1366, %v1369
        %vm1371 = vcmp.lt.s32.totalorder %v1370, 0
        %v1372 = vsub.s32 0, %v1370
        %v1373 = vsel %vm1371, %v1372, %v1370
        %v1374 = vclz %v1373
        %v1375 = vsub.s32 %v1374, 2
        %vm1376 = vcmp.gt.s32.totalorder 0, %v1375
        %v1377 = vsel %vm1376, 0, %v1375
        %v1378 = vsub.s32 32, %v1377
        %v1379 = vshll.u32 %v1370, %v1377
        %v1380 = vshrl.u32 %v1362, %v1378
        %v1381 = vor.u32 %v1379, %v1380
        %v1382 = vsub.s32 4294967266, %v1377
        %v1383 = vadd.s32 %v1382, 127
        %v1384 = vshll.u32 %v1383, 23
        %v1385 = vor.u32 4788187, %v1384
        %v1386 = vand.u32 2147483647, %v1385
        %v1388 = vcvt.s32.f32 %v1381
        %v1389 = vmul.f32 %v1388, %v1386
        %v1390 = vxor.u32 %v1389, 2147483648
        %v1391 = vsel %vm1308, %v1390, %v1389
        %v1392 = vsub.s32 4, %v1368
        %v1393 = vsel %vm1308, %v1392, %v1368
        %v1394 = vsel %vm1307, %v355, %v1391
        %v1395 = vsel %vm1307, 0, %v1393
        %v1396 = vcosq.f32.pop %v1394
        %v1397 = vsinq.f32.pop %v1394
        %vm1398 = vweird.f32 %v355
        %v1399 = vand.u32 %v1395, 3
        %vm1400 = vcmp.lt.s32.totalorder %v1399, 2
        %vm1401 = vcmp.eq.s32.totalorder %v1399, 0
        %v1402 = vxor.u32 %v1397, 2147483648
        %v1403 = vsel %vm1401, %v1396, %v1402
        %vm1404 = vcmp.eq.s32.totalorder %v1399, 2
        %v1405 = vxor.u32 %v1396, 2147483648
        %v1406 = vsel %vm1404, %v1405, %v1397
        %v1407 = vsel %vm1400, %v1403, %v1406
        %v1408 = vsel %vm1398, nan, %v1407
        %v1409 = vand.u32 2147483647, %v356
        %vm1410 = vcmp.le.f32.partialorder %v1409, 0.7853982
        %vm1411 = vcmp.lt.s32.totalorder %v356, 0
        %v1412 = vand.u32 %v356, 2139095040
        %v1413 = vshrl.u32 %v1412, 23
        %v1414 = vsub.s32 %v1413, 127
        %v1415 = vand.u32 2147483647, %v356
        %v1416 = vand.u32 %v1415, 8388607
        %v1417 = vor.u32 %v1416, 8388608
        %v1418 = vsub.s32 0, %v1417
        %v1419 = vadd.s32 %v1414, 1
        %vm1420 = vcmp.gt.s32.totalorder %v1419, 0
        %v1421 = vsel %vm1420, %v1419, 0
        %v1422 = vshrl.u32 %v1421, 5
        %v1423 = vand.u32 %v1421, 31
        %v1424 = vsub.s32 32, %v1423
        %v1425 = vshrl.u32 683565275, %v1424
        %v1426 = vshll.u32 683565275, %v1423
        %v1427 = vshrl.u32 2475754826, %v1424
        %v1428 = vor.u32 %v1426, %v1427
        %v1429 = vshll.u32 2475754826, %v1423
        %v1430 = vshrl.u32 2131351028, %v1424
        %v1431 = vor.u32 %v1429, %v1430
        %v1432 = vshll.u32 2131351028, %v1423
        %v1433 = vshrl.u32 2102212464, %v1424
        %v1434 = vor.u32 %v1432, %v1433
        %v1435 = vshll.u32 2102212464, %v1423
        %v1436 = vshrl.u32 920167782, %v1424
        %v1437 = vor.u32 %v1435, %v1436
        %v1438 = vshll.u32 920167782, %v1423
        %v1439 = vshrl.u32 1326507024, %v1424
        %v1440 = vor.u32 %v1438, %v1439
        %vm1441 = vcmp.lt.s32.totalorder %v1422, 1
        %vm1442 = vcmp.lt.s32.totalorder %v1422, 2
        %vm1443 = vcmp.lt.s32.totalorder %v1422, 3
        %vm1444 = vcmp.lt.s32.totalorder %v1422, 4
        %v1445 = vsel %vm1441, %v1425, %v1428
        %v1446 = vsel %vm1444, %v1434, 2102212464
        %v1447 = vsel %vm1443, %v1431, %v1446
        %v1448 = vsel %vm1442, %v1445, %v1447
        %v1449 = vsel %vm1441, %v1428, %v1431
        %v1450 = vsel %vm1444, %v1437, 920167782
        %v1451 = vsel %vm1443, %v1434, %v1450
        %v1452 = vsel %vm1442, %v1449, %v1451
        %v1453 = vsel %vm1441, %v1431, %v1434
        %v1454 = vsel %vm1444, %v1440, 1326507024
        %v1455 = vsel %vm1443, %v1437, %v1454
        %v1456 = vsel %vm1442, %v1453, %v1455
        %v1457 = vshll.u32 %v1417, 8
        %v1458 = vmul.u32.u64.compose %v1457, %v1456
        %v1459 = vextract.low.u32 %v1458
        %v1460 = vextract.high.u32 %v1458
        %v1461 = vmul.u32.u64.compose %v1457, %v1452
        %v1462 = vextract.low.u32 %v1461
        %v1463 = vextract.high.u32 %v1461
        %v1464 = vmul.u32 %v1457, %v1448
        %v1465 = vadd.s32 %v1460, %v1462
        %vm1466 = vc.u32 %v1460, %v1462
        %v1467 = vadd.s32 %v1463, 1
        %v1468 = vsel %vm1466, %v1467, %v1463
        %v1469 = vadd.s32 %v1464, %v1468
        %v1470 = vadd.s32 %v1469, 536870912
        %v1471 = vshrl.u32 %v1470, 30
        %v1472 = vshll.u32 %v1471, 30
        %v1473 = vsub.s32 %v1469, %v1472
        %vm1474 = vcmp.lt.s32.totalorder %v1473, 0
        %v1475 = vsub.s32 0, %v1473
        %v1476 = vsel %vm1474, %v1475, %v1473
        %v1477 = vclz %v1476
        %v1478 = vsub.s32 %v1477, 2
        %vm1479 = vcmp.gt.s32.totalorder 0, %v1478
        %v1480 = vsel %vm1479, 0, %v1478
        %v1481 = vsub.s32 32, %v1480
        %v1482 = vshll.u32 %v1473, %v1480
        %v1483 = vshrl.u32 %v1465, %v1481
        %v1484 = vor.u32 %v1482, %v1483
        %v1485 = vsub.s32 4294967266, %v1480
        %v1486 = vadd.s32 %v1485, 127
        %v1487 = vshll.u32 %v1486, 23
        %v1488 = vor.u32 4788187, %v1487
        %v1489 = vand.u32 2147483647, %v1488
        %v1491 = vcvt.s32.f32 %v1484
        %v1492 = vmul.f32 %v1491, %v1489
        %v1493 = vxor.u32 %v1492, 2147483648
        %v1494 = vsel %vm1411, %v1493, %v1492
        %v1495 = vsub.s32 4, %v1471
        %v1496 = vsel %vm1411, %v1495, %v1471
        %v1497 = vsel %vm1410, %v356, %v1494
        %v1498 = vsel %vm1410, 0, %v1496
        %v1499 = vcosq.f32.pop %v1497
        %v1500 = vsinq.f32.pop %v1497
        %vm1501 = vweird.f32 %v356
        %v1502 = vand.u32 %v1498, 3
        %vm1503 = vcmp.lt.s32.totalorder %v1502, 2
        %vm1504 = vcmp.eq.s32.totalorder %v1502, 0
        %v1505 = vxor.u32 %v1500, 2147483648
        %v1506 = vsel %vm1504, %v1499, %v1505
        %vm1507 = vcmp.eq.s32.totalorder %v1502, 2
        %v1508 = vxor.u32 %v1499, 2147483648
        %v1509 = vsel %vm1507, %v1508, %v1500
        %v1510 = vsel %vm1503, %v1506, %v1509
        %v1511 = vsel %vm1501, nan, %v1510
        %v1512 = vand.u32 2147483647, %v357
        %vm1513 = vcmp.le.f32.partialorder %v1512, 0.7853982
        %vm1514 = vcmp.lt.s32.totalorder %v357, 0
        %v1515 = vand.u32 %v357, 2139095040
        %v1516 = vshrl.u32 %v1515, 23
        %v1517 = vsub.s32 %v1516, 127
        %v1518 = vand.u32 2147483647, %v357
        %v1519 = vand.u32 %v1518, 8388607
        %v1520 = vor.u32 %v1519, 8388608
        %v1521 = vsub.s32 0, %v1520
        %v1522 = vadd.s32 %v1517, 1
        %vm1523 = vcmp.gt.s32.totalorder %v1522, 0
        %v1524 = vsel %vm1523, %v1522, 0
        %v1525 = vshrl.u32 %v1524, 5
        %v1526 = vand.u32 %v1524, 31
        %v1527 = vsub.s32 32, %v1526
        %v1528 = vshrl.u32 683565275, %v1527
        %v1529 = vshll.u32 683565275, %v1526
        %v1530 = vshrl.u32 2475754826, %v1527
        %v1531 = vor.u32 %v1529, %v1530
        %v1532 = vshll.u32 2475754826, %v1526
        %v1533 = vshrl.u32 2131351028, %v1527
        %v1534 = vor.u32 %v1532, %v1533
        %v1535 = vshll.u32 2131351028, %v1526
        %v1536 = vshrl.u32 2102212464, %v1527
        %v1537 = vor.u32 %v1535, %v1536
        %v1538 = vshll.u32 2102212464, %v1526
        %v1539 = vshrl.u32 920167782, %v1527
        %v1540 = vor.u32 %v1538, %v1539
        %v1541 = vshll.u32 920167782, %v1526
        %v1542 = vshrl.u32 1326507024, %v1527
        %v1543 = vor.u32 %v1541, %v1542
        %vm1544 = vcmp.lt.s32.totalorder %v1525, 1
        %vm1545 = vcmp.lt.s32.totalorder %v1525, 2
        %vm1546 = vcmp.lt.s32.totalorder %v1525, 3
        %vm1547 = vcmp.lt.s32.totalorder %v1525, 4
        %v1548 = vsel %vm1544, %v1528, %v1531
        %v1549 = vsel %vm1547, %v1537, 2102212464
        %v1550 = vsel %vm1546, %v1534, %v1549
        %v1551 = vsel %vm1545, %v1548, %v1550
        %v1552 = vsel %vm1544, %v1531, %v1534
        %v1553 = vsel %vm1547, %v1540, 920167782
        %v1554 = vsel %vm1546, %v1537, %v1553
        %v1555 = vsel %vm1545, %v1552, %v1554
        %v1556 = vsel %vm1544, %v1534, %v1537
        %v1557 = vsel %vm1547, %v1543, 1326507024
        %v1558 = vsel %vm1546, %v1540, %v1557
        %v1559 = vsel %vm1545, %v1556, %v1558
        %v1560 = vshll.u32 %v1520, 8
        %v1561 = vmul.u32.u64.compose %v1560, %v1559
        %v1562 = vextract.low.u32 %v1561
        %v1563 = vextract.high.u32 %v1561
        %v1564 = vmul.u32.u64.compose %v1560, %v1555
        %v1565 = vextract.low.u32 %v1564
        %v1566 = vextract.high.u32 %v1564
        %v1567 = vmul.u32 %v1560, %v1551
        %v1568 = vadd.s32 %v1563, %v1565
        %vm1569 = vc.u32 %v1563, %v1565
        %v1570 = vadd.s32 %v1566, 1
        %v1571 = vsel %vm1569, %v1570, %v1566
        %v1572 = vadd.s32 %v1567, %v1571
        %v1573 = vadd.s32 %v1572, 536870912
        %v1574 = vshrl.u32 %v1573, 30
        %v1575 = vshll.u32 %v1574, 30
        %v1576 = vsub.s32 %v1572, %v1575
        %vm1577 = vcmp.lt.s32.totalorder %v1576, 0
        %v1578 = vsub.s32 0, %v1576
        %v1579 = vsel %vm1577, %v1578, %v1576
        %v1580 = vclz %v1579
        %v1581 = vsub.s32 %v1580, 2
        %vm1582 = vcmp.gt.s32.totalorder 0, %v1581
        %v1583 = vsel %vm1582, 0, %v1581
        %v1584 = vsub.s32 32, %v1583
        %v1585 = vshll.u32 %v1576, %v1583
        %v1586 = vshrl.u32 %v1568, %v1584
        %v1587 = vor.u32 %v1585, %v1586
        %v1588 = vsub.s32 4294967266, %v1583
        %v1589 = vadd.s32 %v1588, 127
        %v1590 = vshll.u32 %v1589, 23
        %v1591 = vor.u32 4788187, %v1590
        %v1592 = vand.u32 2147483647, %v1591
        %v1594 = vcvt.s32.f32 %v1587
        %v1595 = vmul.f32 %v1594, %v1592
        %v1596 = vxor.u32 %v1595, 2147483648
        %v1597 = vsel %vm1514, %v1596, %v1595
        %v1598 = vsub.s32 4, %v1574
        %v1599 = vsel %vm1514, %v1598, %v1574
        %v1600 = vsel %vm1513, %v357, %v1597
        %v1601 = vsel %vm1513, 0, %v1599
        %v1602 = vcosq.f32.pop %v1600
        %v1603 = vsinq.f32.pop %v1600
        %vm1604 = vweird.f32 %v357
        %v1605 = vand.u32 %v1601, 3
        %vm1606 = vcmp.lt.s32.totalorder %v1605, 2
        %vm1607 = vcmp.eq.s32.totalorder %v1605, 0
        %v1608 = vxor.u32 %v1603, 2147483648
        %v1609 = vsel %vm1607, %v1602, %v1608
        %vm1610 = vcmp.eq.s32.totalorder %v1605, 2
        %v1611 = vxor.u32 %v1602, 2147483648
        %v1612 = vsel %vm1610, %v1611, %v1603
        %v1613 = vsel %vm1606, %v1609, %v1612
        %v1614 = vsel %vm1604, nan, %v1613
        %v1615 = vand.u32 2147483647, %v358
        %vm1616 = vcmp.le.f32.partialorder %v1615, 0.7853982
        %vm1617 = vcmp.lt.s32.totalorder %v358, 0
        %v1618 = vand.u32 %v358, 2139095040
        %v1619 = vshrl.u32 %v1618, 23
        %v1620 = vsub.s32 %v1619, 127
        %v1621 = vand.u32 2147483647, %v358
        %v1622 = vand.u32 %v1621, 8388607
        %v1623 = vor.u32 %v1622, 8388608
        %v1624 = vsub.s32 0, %v1623
        %v1625 = vadd.s32 %v1620, 1
        %vm1626 = vcmp.gt.s32.totalorder %v1625, 0
        %v1627 = vsel %vm1626, %v1625, 0
        %v1628 = vshrl.u32 %v1627, 5
        %v1629 = vand.u32 %v1627, 31
        %v1630 = vsub.s32 32, %v1629
        %v1631 = vshrl.u32 683565275, %v1630
        %v1632 = vshll.u32 683565275, %v1629
        %v1633 = vshrl.u32 2475754826, %v1630
        %v1634 = vor.u32 %v1632, %v1633
        %v1635 = vshll.u32 2475754826, %v1629
        %v1636 = vshrl.u32 2131351028, %v1630
        %v1637 = vor.u32 %v1635, %v1636
        %v1638 = vshll.u32 2131351028, %v1629
        %v1639 = vshrl.u32 2102212464, %v1630
        %v1640 = vor.u32 %v1638, %v1639
        %v1641 = vshll.u32 2102212464, %v1629
        %v1642 = vshrl.u32 920167782, %v1630
        %v1643 = vor.u32 %v1641, %v1642
        %v1644 = vshll.u32 920167782, %v1629
        %v1645 = vshrl.u32 1326507024, %v1630
        %v1646 = vor.u32 %v1644, %v1645
        %vm1647 = vcmp.lt.s32.totalorder %v1628, 1
        %vm1648 = vcmp.lt.s32.totalorder %v1628, 2
        %vm1649 = vcmp.lt.s32.totalorder %v1628, 3
        %vm1650 = vcmp.lt.s32.totalorder %v1628, 4
        %v1651 = vsel %vm1647, %v1631, %v1634
        %v1652 = vsel %vm1650, %v1640, 2102212464
        %v1653 = vsel %vm1649, %v1637, %v1652
        %v1654 = vsel %vm1648, %v1651, %v1653
        %v1655 = vsel %vm1647, %v1634, %v1637
        %v1656 = vsel %vm1650, %v1643, 920167782
        %v1657 = vsel %vm1649, %v1640, %v1656
        %v1658 = vsel %vm1648, %v1655, %v1657
        %v1659 = vsel %vm1647, %v1637, %v1640
        %v1660 = vsel %vm1650, %v1646, 1326507024
        %v1661 = vsel %vm1649, %v1643, %v1660
        %v1662 = vsel %vm1648, %v1659, %v1661
        %v1663 = vshll.u32 %v1623, 8
        %v1664 = vmul.u32.u64.compose %v1663, %v1662
        %v1665 = vextract.low.u32 %v1664
        %v1666 = vextract.high.u32 %v1664
        %v1667 = vmul.u32.u64.compose %v1663, %v1658
        %v1668 = vextract.low.u32 %v1667
        %v1669 = vextract.high.u32 %v1667
        %v1670 = vmul.u32 %v1663, %v1654
        %v1671 = vadd.s32 %v1666, %v1668
        %vm1672 = vc.u32 %v1666, %v1668
        %v1673 = vadd.s32 %v1669, 1
        %v1674 = vsel %vm1672, %v1673, %v1669
        %v1675 = vadd.s32 %v1670, %v1674
        %v1676 = vadd.s32 %v1675, 536870912
        %v1677 = vshrl.u32 %v1676, 30
        %v1678 = vshll.u32 %v1677, 30
        %v1679 = vsub.s32 %v1675, %v1678
        %vm1680 = vcmp.lt.s32.totalorder %v1679, 0
        %v1681 = vsub.s32 0, %v1679
        %v1682 = vsel %vm1680, %v1681, %v1679
        %v1683 = vclz %v1682
        %v1684 = vsub.s32 %v1683, 2
        %vm1685 = vcmp.gt.s32.totalorder 0, %v1684
        %v1686 = vsel %vm1685, 0, %v1684
        %v1687 = vsub.s32 32, %v1686
        %v1688 = vshll.u32 %v1679, %v1686
        %v1689 = vshrl.u32 %v1671, %v1687
        %v1690 = vor.u32 %v1688, %v1689
        %v1691 = vsub.s32 4294967266, %v1686
        %v1692 = vadd.s32 %v1691, 127
        %v1693 = vshll.u32 %v1692, 23
        %v1694 = vor.u32 4788187, %v1693
        %v1695 = vand.u32 2147483647, %v1694
        %v1697 = vcvt.s32.f32 %v1690
        %v1698 = vmul.f32 %v1697, %v1695
        %v1699 = vxor.u32 %v1698, 2147483648
        %v1700 = vsel %vm1617, %v1699, %v1698
        %v1701 = vsub.s32 4, %v1677
        %v1702 = vsel %vm1617, %v1701, %v1677
        %v1703 = vsel %vm1616, %v358, %v1700
        %v1704 = vsel %vm1616, 0, %v1702
        %v1705 = vcosq.f32.pop %v1703
        %v1706 = vsinq.f32.pop %v1703
        %vm1707 = vweird.f32 %v358
        %v1708 = vand.u32 %v1704, 3
        %vm1709 = vcmp.lt.s32.totalorder %v1708, 2
        %vm1710 = vcmp.eq.s32.totalorder %v1708, 0
        %v1711 = vxor.u32 %v1706, 2147483648
        %v1712 = vsel %vm1710, %v1705, %v1711
        %vm1713 = vcmp.eq.s32.totalorder %v1708, 2
        %v1714 = vxor.u32 %v1705, 2147483648
        %v1715 = vsel %vm1713, %v1714, %v1706
        %v1716 = vsel %vm1709, %v1712, %v1715
        %v1717 = vsel %vm1707, nan, %v1716
        %v1718 = vand.u32 2147483647, %v359
        %vm1719 = vcmp.le.f32.partialorder %v1718, 0.7853982
        %vm1720 = vcmp.lt.s32.totalorder %v359, 0
        %v1721 = vand.u32 %v359, 2139095040
        %v1722 = vshrl.u32 %v1721, 23
        %v1723 = vsub.s32 %v1722, 127
        %v1724 = vand.u32 2147483647, %v359
        %v1725 = vand.u32 %v1724, 8388607
        %v1726 = vor.u32 %v1725, 8388608
        %v1727 = vsub.s32 0, %v1726
        %v1728 = vadd.s32 %v1723, 1
        %vm1729 = vcmp.gt.s32.totalorder %v1728, 0
        %v1730 = vsel %vm1729, %v1728, 0
        %v1731 = vshrl.u32 %v1730, 5
        %v1732 = vand.u32 %v1730, 31
        %v1733 = vsub.s32 32, %v1732
        %v1734 = vshrl.u32 683565275, %v1733
        %v1735 = vshll.u32 683565275, %v1732
        %v1736 = vshrl.u32 2475754826, %v1733
        %v1737 = vor.u32 %v1735, %v1736
        %v1738 = vshll.u32 2475754826, %v1732
        %v1739 = vshrl.u32 2131351028, %v1733
        %v1740 = vor.u32 %v1738, %v1739
        %v1741 = vshll.u32 2131351028, %v1732
        %v1742 = vshrl.u32 2102212464, %v1733
        %v1743 = vor.u32 %v1741, %v1742
        %v1744 = vshll.u32 2102212464, %v1732
        %v1745 = vshrl.u32 920167782, %v1733
        %v1746 = vor.u32 %v1744, %v1745
        %v1747 = vshll.u32 920167782, %v1732
        %v1748 = vshrl.u32 1326507024, %v1733
        %v1749 = vor.u32 %v1747, %v1748
        %vm1750 = vcmp.lt.s32.totalorder %v1731, 1
        %vm1751 = vcmp.lt.s32.totalorder %v1731, 2
        %vm1752 = vcmp.lt.s32.totalorder %v1731, 3
        %vm1753 = vcmp.lt.s32.totalorder %v1731, 4
        %v1754 = vsel %vm1750, %v1734, %v1737
        %v1755 = vsel %vm1753, %v1743, 2102212464
        %v1756 = vsel %vm1752, %v1740, %v1755
        %v1757 = vsel %vm1751, %v1754, %v1756
        %v1758 = vsel %vm1750, %v1737, %v1740
        %v1759 = vsel %vm1753, %v1746, 920167782
        %v1760 = vsel %vm1752, %v1743, %v1759
        %v1761 = vsel %vm1751, %v1758, %v1760
        %v1762 = vsel %vm1750, %v1740, %v1743
        %v1763 = vsel %vm1753, %v1749, 1326507024
        %v1764 = vsel %vm1752, %v1746, %v1763
        %v1765 = vsel %vm1751, %v1762, %v1764
        %v1766 = vshll.u32 %v1726, 8
        %v1767 = vmul.u32.u64.compose %v1766, %v1765
        %v1768 = vextract.low.u32 %v1767
        %v1769 = vextract.high.u32 %v1767
        %v1770 = vmul.u32.u64.compose %v1766, %v1761
        %v1771 = vextract.low.u32 %v1770
        %v1772 = vextract.high.u32 %v1770
        %v1773 = vmul.u32 %v1766, %v1757
        %v1774 = vadd.s32 %v1769, %v1771
        %vm1775 = vc.u32 %v1769, %v1771
        %v1776 = vadd.s32 %v1772, 1
        %v1777 = vsel %vm1775, %v1776, %v1772
        %v1778 = vadd.s32 %v1773, %v1777
        %v1779 = vadd.s32 %v1778, 536870912
        %v1780 = vshrl.u32 %v1779, 30
        %v1781 = vshll.u32 %v1780, 30
        %v1782 = vsub.s32 %v1778, %v1781
        %vm1783 = vcmp.lt.s32.totalorder %v1782, 0
        %v1784 = vsub.s32 0, %v1782
        %v1785 = vsel %vm1783, %v1784, %v1782
        %v1786 = vclz %v1785
        %v1787 = vsub.s32 %v1786, 2
        %vm1788 = vcmp.gt.s32.totalorder 0, %v1787
        %v1789 = vsel %vm1788, 0, %v1787
        %v1790 = vsub.s32 32, %v1789
        %v1791 = vshll.u32 %v1782, %v1789
        %v1792 = vshrl.u32 %v1774, %v1790
        %v1793 = vor.u32 %v1791, %v1792
        %v1794 = vsub.s32 4294967266, %v1789
        %v1795 = vadd.s32 %v1794, 127
        %v1796 = vshll.u32 %v1795, 23
        %v1797 = vor.u32 4788187, %v1796
        %v1798 = vand.u32 2147483647, %v1797
        %v1800 = vcvt.s32.f32 %v1793
        %v1801 = vmul.f32 %v1800, %v1798
        %v1802 = vxor.u32 %v1801, 2147483648
        %v1803 = vsel %vm1720, %v1802, %v1801
        %v1804 = vsub.s32 4, %v1780
        %v1805 = vsel %vm1720, %v1804, %v1780
        %v1806 = vsel %vm1719, %v359, %v1803
        %v1807 = vsel %vm1719, 0, %v1805
        %v1808 = vcosq.f32.pop %v1806
        %v1809 = vsinq.f32.pop %v1806
        %vm1810 = vweird.f32 %v359
        %v1811 = vand.u32 %v1807, 3
        %vm1812 = vcmp.lt.s32.totalorder %v1811, 2
        %vm1813 = vcmp.eq.s32.totalorder %v1811, 0
        %v1814 = vxor.u32 %v1809, 2147483648
        %v1815 = vsel %vm1813, %v1808, %v1814
        %vm1816 = vcmp.eq.s32.totalorder %v1811, 2
        %v1817 = vxor.u32 %v1808, 2147483648
        %v1818 = vsel %vm1816, %v1817, %v1809
        %v1819 = vsel %vm1812, %v1815, %v1818
        %v1820 = vsel %vm1810, nan, %v1819
        %v1821 = vand.u32 2147483647, %v360
        %vm1822 = vcmp.le.f32.partialorder %v1821, 0.7853982
        %vm1823 = vcmp.lt.s32.totalorder %v360, 0
        %v1824 = vand.u32 %v360, 2139095040
        %v1825 = vshrl.u32 %v1824, 23
        %v1826 = vsub.s32 %v1825, 127
        %v1827 = vand.u32 2147483647, %v360
        %v1828 = vand.u32 %v1827, 8388607
        %v1829 = vor.u32 %v1828, 8388608
        %v1830 = vsub.s32 0, %v1829
        %v1831 = vadd.s32 %v1826, 1
        %vm1832 = vcmp.gt.s32.totalorder %v1831, 0
        %v1833 = vsel %vm1832, %v1831, 0
        %v1834 = vshrl.u32 %v1833, 5
        %v1835 = vand.u32 %v1833, 31
        %v1836 = vsub.s32 32, %v1835
        %v1837 = vshrl.u32 683565275, %v1836
        %v1838 = vshll.u32 683565275, %v1835
        %v1839 = vshrl.u32 2475754826, %v1836
        %v1840 = vor.u32 %v1838, %v1839
        %v1841 = vshll.u32 2475754826, %v1835
        %v1842 = vshrl.u32 2131351028, %v1836
        %v1843 = vor.u32 %v1841, %v1842
        %v1844 = vshll.u32 2131351028, %v1835
        %v1845 = vshrl.u32 2102212464, %v1836
        %v1846 = vor.u32 %v1844, %v1845
        %v1847 = vshll.u32 2102212464, %v1835
        %v1848 = vshrl.u32 920167782, %v1836
        %v1849 = vor.u32 %v1847, %v1848
        %v1850 = vshll.u32 920167782, %v1835
        %v1851 = vshrl.u32 1326507024, %v1836
        %v1852 = vor.u32 %v1850, %v1851
        %vm1853 = vcmp.lt.s32.totalorder %v1834, 1
        %vm1854 = vcmp.lt.s32.totalorder %v1834, 2
        %vm1855 = vcmp.lt.s32.totalorder %v1834, 3
        %vm1856 = vcmp.lt.s32.totalorder %v1834, 4
        %v1857 = vsel %vm1853, %v1837, %v1840
        %v1858 = vsel %vm1856, %v1846, 2102212464
        %v1859 = vsel %vm1855, %v1843, %v1858
        %v1860 = vsel %vm1854, %v1857, %v1859
        %v1861 = vsel %vm1853, %v1840, %v1843
        %v1862 = vsel %vm1856, %v1849, 920167782
        %v1863 = vsel %vm1855, %v1846, %v1862
        %v1864 = vsel %vm1854, %v1861, %v1863
        %v1865 = vsel %vm1853, %v1843, %v1846
        %v1866 = vsel %vm1856, %v1852, 1326507024
        %v1867 = vsel %vm1855, %v1849, %v1866
        %v1868 = vsel %vm1854, %v1865, %v1867
        %v1869 = vshll.u32 %v1829, 8
        %v1870 = vmul.u32.u64.compose %v1869, %v1868
        %v1871 = vextract.low.u32 %v1870
        %v1872 = vextract.high.u32 %v1870
        %v1873 = vmul.u32.u64.compose %v1869, %v1864
        %v1874 = vextract.low.u32 %v1873
        %v1875 = vextract.high.u32 %v1873
        %v1876 = vmul.u32 %v1869, %v1860
        %v1877 = vadd.s32 %v1872, %v1874
        %vm1878 = vc.u32 %v1872, %v1874
        %v1879 = vadd.s32 %v1875, 1
        %v1880 = vsel %vm1878, %v1879, %v1875
        %v1881 = vadd.s32 %v1876, %v1880
        %v1882 = vadd.s32 %v1881, 536870912
        %v1883 = vshrl.u32 %v1882, 30
        %v1884 = vshll.u32 %v1883, 30
        %v1885 = vsub.s32 %v1881, %v1884
        %vm1886 = vcmp.lt.s32.totalorder %v1885, 0
        %v1887 = vsub.s32 0, %v1885
        %v1888 = vsel %vm1886, %v1887, %v1885
        %v1889 = vclz %v1888
        %v1890 = vsub.s32 %v1889, 2
        %vm1891 = vcmp.gt.s32.totalorder 0, %v1890
        %v1892 = vsel %vm1891, 0, %v1890
        %v1893 = vsub.s32 32, %v1892
        %v1894 = vshll.u32 %v1885, %v1892
        %v1895 = vshrl.u32 %v1877, %v1893
        %v1896 = vor.u32 %v1894, %v1895
        %v1897 = vsub.s32 4294967266, %v1892
        %v1898 = vadd.s32 %v1897, 127
        %v1899 = vshll.u32 %v1898, 23
        %v1900 = vor.u32 4788187, %v1899
        %v1901 = vand.u32 2147483647, %v1900
        %v1903 = vcvt.s32.f32 %v1896
        %v1904 = vmul.f32 %v1903, %v1901
        %v1905 = vxor.u32 %v1904, 2147483648
        %v1906 = vsel %vm1823, %v1905, %v1904
        %v1907 = vsub.s32 4, %v1883
        %v1908 = vsel %vm1823, %v1907, %v1883
        %v1909 = vsel %vm1822, %v360, %v1906
        %v1910 = vsel %vm1822, 0, %v1908
        %v1911 = vcosq.f32.pop %v1909
        %v1912 = vsinq.f32.pop %v1909
        %vm1913 = vweird.f32 %v360
        %v1914 = vand.u32 %v1910, 3
        %vm1915 = vcmp.lt.s32.totalorder %v1914, 2
        %vm1916 = vcmp.eq.s32.totalorder %v1914, 0
        %v1917 = vxor.u32 %v1912, 2147483648
        %v1918 = vsel %vm1916, %v1911, %v1917
        %vm1919 = vcmp.eq.s32.totalorder %v1914, 2
        %v1920 = vxor.u32 %v1911, 2147483648
        %v1921 = vsel %vm1919, %v1920, %v1912
        %v1922 = vsel %vm1915, %v1918, %v1921
        %v1923 = vsel %vm1913, nan, %v1922
        %v1924 = vand.u32 2147483647, %v361
        %vm1925 = vcmp.le.f32.partialorder %v1924, 0.7853982
        %vm1926 = vcmp.lt.s32.totalorder %v361, 0
        %v1927 = vand.u32 %v361, 2139095040
        %v1928 = vshrl.u32 %v1927, 23
        %v1929 = vsub.s32 %v1928, 127
        %v1930 = vand.u32 2147483647, %v361
        %v1931 = vand.u32 %v1930, 8388607
        %v1932 = vor.u32 %v1931, 8388608
        %v1933 = vsub.s32 0, %v1932
        %v1934 = vadd.s32 %v1929, 1
        %vm1935 = vcmp.gt.s32.totalorder %v1934, 0
        %v1936 = vsel %vm1935, %v1934, 0
        %v1937 = vshrl.u32 %v1936, 5
        %v1938 = vand.u32 %v1936, 31
        %v1939 = vsub.s32 32, %v1938
        %v1940 = vshrl.u32 683565275, %v1939
        %v1941 = vshll.u32 683565275, %v1938
        %v1942 = vshrl.u32 2475754826, %v1939
        %v1943 = vor.u32 %v1941, %v1942
        %v1944 = vshll.u32 2475754826, %v1938
        %v1945 = vshrl.u32 2131351028, %v1939
        %v1946 = vor.u32 %v1944, %v1945
        %v1947 = vshll.u32 2131351028, %v1938
        %v1948 = vshrl.u32 2102212464, %v1939
        %v1949 = vor.u32 %v1947, %v1948
        %v1950 = vshll.u32 2102212464, %v1938
        %v1951 = vshrl.u32 920167782, %v1939
        %v1952 = vor.u32 %v1950, %v1951
        %v1953 = vshll.u32 920167782, %v1938
        %v1954 = vshrl.u32 1326507024, %v1939
        %v1955 = vor.u32 %v1953, %v1954
        %vm1956 = vcmp.lt.s32.totalorder %v1937, 1
        %vm1957 = vcmp.lt.s32.totalorder %v1937, 2
        %vm1958 = vcmp.lt.s32.totalorder %v1937, 3
        %vm1959 = vcmp.lt.s32.totalorder %v1937, 4
        %v1960 = vsel %vm1956, %v1940, %v1943
        %v1961 = vsel %vm1959, %v1949, 2102212464
        %v1962 = vsel %vm1958, %v1946, %v1961
        %v1963 = vsel %vm1957, %v1960, %v1962
        %v1964 = vsel %vm1956, %v1943, %v1946
        %v1965 = vsel %vm1959, %v1952, 920167782
        %v1966 = vsel %vm1958, %v1949, %v1965
        %v1967 = vsel %vm1957, %v1964, %v1966
        %v1968 = vsel %vm1956, %v1946, %v1949
        %v1969 = vsel %vm1959, %v1955, 1326507024
        %v1970 = vsel %vm1958, %v1952, %v1969
        %v1971 = vsel %vm1957, %v1968, %v1970
        %v1972 = vshll.u32 %v1932, 8
        %v1973 = vmul.u32.u64.compose %v1972, %v1971
        %v1974 = vextract.low.u32 %v1973
        %v1975 = vextract.high.u32 %v1973
        %v1976 = vmul.u32.u64.compose %v1972, %v1967
        %v1977 = vextract.low.u32 %v1976
        %v1978 = vextract.high.u32 %v1976
        %v1979 = vmul.u32 %v1972, %v1963
        %v1980 = vadd.s32 %v1975, %v1977
        %vm1981 = vc.u32 %v1975, %v1977
        %v1982 = vadd.s32 %v1978, 1
        %v1983 = vsel %vm1981, %v1982, %v1978
        %v1984 = vadd.s32 %v1979, %v1983
        %v1985 = vadd.s32 %v1984, 536870912
        %v1986 = vshrl.u32 %v1985, 30
        %v1987 = vshll.u32 %v1986, 30
        %v1988 = vsub.s32 %v1984, %v1987
        %vm1989 = vcmp.lt.s32.totalorder %v1988, 0
        %v1990 = vsub.s32 0, %v1988
        %v1991 = vsel %vm1989, %v1990, %v1988
        %v1992 = vclz %v1991
        %v1993 = vsub.s32 %v1992, 2
        %vm1994 = vcmp.gt.s32.totalorder 0, %v1993
        %v1995 = vsel %vm1994, 0, %v1993
        %v1996 = vsub.s32 32, %v1995
        %v1997 = vshll.u32 %v1988, %v1995
        %v1998 = vshrl.u32 %v1980, %v1996
        %v1999 = vor.u32 %v1997, %v1998
        %v2000 = vsub.s32 4294967266, %v1995
        %v2001 = vadd.s32 %v2000, 127
        %v2002 = vshll.u32 %v2001, 23
        %v2003 = vor.u32 4788187, %v2002
        %v2004 = vand.u32 2147483647, %v2003
        %v2006 = vcvt.s32.f32 %v1999
        %v2007 = vmul.f32 %v2006, %v2004
        %v2008 = vxor.u32 %v2007, 2147483648
        %v2009 = vsel %vm1926, %v2008, %v2007
        %v2010 = vsub.s32 4, %v1986
        %v2011 = vsel %vm1926, %v2010, %v1986
        %v2012 = vsel %vm1925, %v361, %v2009
        %v2013 = vsel %vm1925, 0, %v2011
        %v2014 = vcosq.f32.pop %v2012
        %v2015 = vsinq.f32.pop %v2012
        %vm2016 = vweird.f32 %v361
        %v2017 = vand.u32 %v2013, 3
        %vm2018 = vcmp.lt.s32.totalorder %v2017, 2
        %vm2019 = vcmp.eq.s32.totalorder %v2017, 0
        %v2020 = vxor.u32 %v2015, 2147483648
        %v2021 = vsel %vm2019, %v2014, %v2020
        %vm2022 = vcmp.eq.s32.totalorder %v2017, 2
        %v2023 = vxor.u32 %v2014, 2147483648
        %v2024 = vsel %vm2022, %v2023, %v2015
        %v2025 = vsel %vm2018, %v2021, %v2024
        %v2026 = vsel %vm2016, nan, %v2025
        %2035 = vrot.lane.b32.xlu0 %v1305, 64
        %v2036 = vpop.permute.xlu0 %2035
        %2037 = vrot.lane.b32.xlu0 %v1408, 64
        %v2038 = vpop.permute.xlu0 %2037
        %2039 = vrot.lane.b32.xlu0 %v1511, 64
        %v2040 = vpop.permute.xlu0 %2039
        %2041 = vrot.lane.b32.xlu0 %v1614, 64
        %v2042 = vpop.permute.xlu0 %2041
        %2043 = vrot.lane.b32.xlu0 %v1717, 64
        %v2044 = vpop.permute.xlu0 %2043
        %2045 = vrot.lane.b32.xlu0 %v1820, 64
        %v2046 = vpop.permute.xlu0 %2045
        %2047 = vrot.lane.b32.xlu0 %v1923, 64
        %v2048 = vpop.permute.xlu0 %2047
        %2049 = vrot.lane.b32.xlu0 %v2026, 64
        %v2050 = vpop.permute.xlu0 %2049
        %vm2059 = vcmask 1048064
        %2060 = vst.msk [vmem:[%s137] sm:$0xff] %vm2059, %v2036
        %2061 = vst.msk [vmem:[%s137 + $0x8] sm:$0xff] %vm2059, %v2038
        %2062 = vst.msk [vmem:[%s137 + $0x10] sm:$0xff] %vm2059, %v2040
        %2063 = vst.msk [vmem:[%s137 + $0x18] sm:$0xff] %vm2059, %v2042
        %2064 = vst.msk [vmem:[%s137 + $0x20] sm:$0xff] %vm2059, %v2044
        %2065 = vst.msk [vmem:[%s137 + $0x28] sm:$0xff] %vm2059, %v2046
        %2066 = vst.msk [vmem:[%s137 + $0x30] sm:$0xff] %vm2059, %v2048
        %2067 = vst.msk [vmem:[%s137 + $0x38] sm:$0xff] %vm2059, %v2050
        %s2068 = sand.u32 %s71, 1
        %s2069 = scalar_lea.sflag [#allocation3], %s2068
        %s2070 = sand.u32 %s71, 1
        %s2071 = smul.addr %s2070, 64
        %s2072 = scalar_lea.vmem [#allocation2], %s2071
        // Predicated region
        $region29: #{tpu_custom_call.1} parent=27 // pred_check
          %p2073 = pneg %p81
        $region30: #{tpu_custom_call.1} parent=27 // pred_check_branch
          %2075 = sbr.rel (%p2073) target = $region32
        $region31: #{tpu_custom_call.1} parent=27 // pred_region
          %s2076 = smul.u32 8, %s16
          %s2078 = ssub.s32 1024, 1024
          %2079 = vsyncadd %s2069, %s2078
          %s2080 = smul.addr %s2076, 128
          %s2081 = scalar_lea.hbm %s2, %s2080
          %s2082 = sshll.u32 %s2072, 4
          %s2083 = int_to_ptr.vmem [resolvable:$true] %s2082
          %2088 = dma.vmem_to_hbm [thread:$0]  %s2083, 1024, %s2081, %s2069, 128, 128, 8
        $region32: #{tpu_custom_call.1} parent=27 // pred_fallthru
          _
      $region28: #{tpu_custom_call.1} parent=5 // pred_fallthru
        _
      %p2089 = scmp.le.s32.totalorder 2, %s11
      // Predicated region
      $region33: #{tpu_custom_call.1} parent=5 // pred_check
        %p2090 = pneg %p2089
      $region34: #{tpu_custom_call.1} parent=5 // pred_check_branch
        %2092 = sbr.rel (%p2090) target = $region36
      $region35: #{tpu_custom_call.1} parent=5 // pred_region
        %s2093 = ssub.s32 %s11, 2
        // Predicated region
        $region37: #{tpu_custom_call.1} parent=35 // pred_check
          %p2094 = pneg %p87
        $region38: #{tpu_custom_call.1} parent=35 // pred_check_branch
          %2096 = sbr.rel (%p2094) target = $region40
        $region39: #{tpu_custom_call.1} parent=35 // pred_region
          %s2097 = sand.u32 %s72, 1
          %s2098 = scalar_lea.sflag [#allocation3], %s2097
          %s2099 = sand.u32 %s72, 1
          %s2100 = smul.addr %s2099, 64
          %s2101 = scalar_lea.vmem [#allocation2], %s2100
          %2102 = dma.done %s2098, 1024
        $region40: #{tpu_custom_call.1} parent=35 // pred_fallthru
          _
      $region36: #{tpu_custom_call.1} parent=5 // pred_fallthru
        _
    $region6: #{tpu_custom_call.1} parent=1 // loop_footer
      %s15 = sadd.s32 1, %s11
    $region7: #{tpu_custom_call.1} parent=1 // loop_footer_branch
      %10 = sbr.rel target = $region3
    $region8: #{tpu_custom_call.1} parent=1 // loop_exit
      _
    %2103 = vsyncpa [#allocation3], 1
    %s2104 = scalar_lea.sflag [#allocation3], 1
    %2105 = vsyncpa %s2104, 1

</llo_original>
